<compile_context>
chip_gen: v5e
topology: v5e:2x2
jax: 0.10.0
libtpu: 0.0.40
codegen_flags: <defaults>
</compile_context>

<pallas_src>
import numpy as np
import jax
import jax.numpy as jnp
from jax import lax
from jax.experimental import pallas as pl
from jax.experimental.pallas import tpu as pltpu


# ---------------------------------------------------------------------------
# Fused kernel (whole MGCN_rgb forward for one batch element)
# ---------------------------------------------------------------------------
def _make_fused_kernel(mid, n_list):
    """Builds the fused kernel body for static branch sizes `n_list`."""
    n_branches = len(n_list)
    # Projection row layout: [Xr_1 | Xr_2 | Xr_3 | B_1 | B_2 | B_3]
    xr_offs = [i * mid for i in range(n_branches)]
    b_offs = []
    off = n_branches * mid
    for n in n_list:
        b_offs.append(off)
        off += n

    def kernel(x_ref, wproj_ref, bproj_ref, *rest):
        # rest: (w1, b1, w2t, b2) per branch, then cw, cwpi, btot, o_ref
        branch_refs = rest[:4 * n_branches]
        cw_ref, cwpi_ref, btot_ref, o_ref = rest[4 * n_branches:]

        x = x_ref[0]                                           # (Cin, HW) lane-dense

        # Residual-path contribution of the final conv: depends only on x, so
        # the MXU can overlap it with all of the branch compute below.
        base = jnp.dot(cw_ref[...], x,
                       preferred_element_type=jnp.float32)                   # (Cout, HW)

        # All theta/phi 1x1 convs of all three branches in one MXU matmul.
        proj = jnp.dot(wproj_ref[...], x,
                       preferred_element_type=jnp.float32) + bproj_ref[...]  # (Rtot, HW)

        ys = []
        for bi in range(n_branches):
            w1_ref, b1_ref, w2t_ref, b2_ref = branch_refs[4 * bi:4 * bi + 4]
            n_i = n_list[bi]
            Bm = proj[b_offs[bi]:b_offs[bi] + n_i]             # (N_i, HW)
            Xr = proj[xr_offs[bi]:xr_offs[bi] + mid]           # (mid, HW)

            # v = B @ x_reduced  (contract over HW)
            v = lax.dot_general(Bm, Xr, (((1,), (1,)), ((), ())),
                                preferred_element_type=jnp.float32)          # (N_i, mid)

            # GCN: h = v - conv1d_1(v); z = conv1d_2(h^T)^T
            h1 = jnp.dot(w1_ref[...], v,
                         preferred_element_type=jnp.float32) + b1_ref[...]
            hh = v - h1
            z = jnp.dot(hh, w2t_ref[...],
                        preferred_element_type=jnp.float32) + b2_ref[...]    # (N_i, mid)

            # y = B^T @ z, kept in (mid, HW) layout (lane-dense)
            ys.append(lax.dot_general(z, Bm, (((0,), (0,)), ((), ())),
                                      preferred_element_type=jnp.float32))   # (mid, HW)

        y_all = jnp.concatenate(ys, axis=0)                    # (3*mid, HW)

        # conv(x + sum_i phi_inv_i(y_i)) with phi_inv folded into the conv:
        #   out = conv_w @ x + (conv_w @ phi_inv_w_all) @ y_all + bias_total
        o_ref[0] = (base
                    + jnp.dot(cwpi_ref[...], y_all,
                              preferred_element_type=jnp.float32)
                    + btot_ref[...])                                          # (Cout, HW)

    return kernel


# ---------------------------------------------------------------------------
# Wrapper (pallas_call plumbing)
# ---------------------------------------------------------------------------
def _full_spec(arr):
    zeros = (0,) * arr.ndim
    return pl.BlockSpec(arr.shape, lambda b, _z=zeros: _z)


def _cost_estimate(bs, cin, cout, hw, mid, n_list, weights):
    ntot = sum(n_list)
    flops = 2 * cout * cin * hw                                # residual-path conv
    flops += 2 * (3 * mid + ntot) * cin * hw                   # fused theta/phi proj
    for n in n_list:
        flops += 2 * n * mid * hw                              # v
        flops += 2 * n * n * mid                               # conv1d_1
        flops += 2 * n * mid * mid                             # conv1d_2
        flops += 2 * mid * n * hw                              # y = B^T z
    flops += 2 * cout * (3 * mid) * hw                         # folded phi_inv+conv
    flops *= bs
    bytes_accessed = 4 * (bs * cin * hw + bs * cout * hw)
    bytes_accessed += sum(int(np.prod(w.shape)) * 4 for w in weights)
    return pl.CostEstimate(flops=flops, transcendentals=0,
                           bytes_accessed=bytes_accessed)


def mgcn_rgb_pallas(x_flat, weights, mid, n_list, cout):
    bs, cin, hw = x_flat.shape
    kernel = _make_fused_kernel(mid, n_list)
    in_specs = [pl.BlockSpec((1, cin, hw), lambda b: (b, 0, 0))]
    in_specs += [_full_spec(w) for w in weights]
    return pl.pallas_call(
        kernel,
        out_shape=jax.ShapeDtypeStruct((bs, cout, hw), jnp.float32),
        grid=(bs,),
        in_specs=in_specs,
        out_specs=pl.BlockSpec((1, cout, hw), lambda b: (b, 0, 0)),
        compiler_params=pltpu.CompilerParams(dimension_semantics=("parallel",)),
        cost_estimate=_cost_estimate(bs, cin, cout, hw, mid, n_list, weights),
    )(x_flat, *weights)


def _fused_weights(params):
    """Concatenate / fold per-branch weights into the fused-kernel layout."""
    branches = [params["glore1"], params["glore2"], params["glore3"]]
    # Projection rows: [phi_1 | phi_2 | phi_3 | theta_1 | theta_2 | theta_3]
    wproj = jnp.concatenate([b["phi_w"] for b in branches]
                            + [b["theta_w"] for b in branches], axis=0)      # (Rtot, Cin)
    bproj = jnp.concatenate([b["phi_b"] for b in branches]
                            + [b["theta_b"] for b in branches]).reshape(-1, 1)
    per_branch = []
    for b in branches:
        per_branch += [b["w1"],                       # (N, N)
                       b["b1"].reshape(-1, 1),        # (N, 1)
                       b["w2"].T,                     # (mid, mid)
                       b["b2"].reshape(1, -1)]        # (1, mid)
    # Fold the three phi_inv convs into the final conv (done once, in f32):
    #   conv(x + sum_i phi_inv_i(y_i)) = cw@x + (cw@piw_all)@y_all + btot
    piw_all = jnp.concatenate([b["phi_inv_w"] for b in branches], axis=1)    # (Cin, 3*mid)
    pib_sum = (branches[0]["phi_inv_b"] + branches[1]["phi_inv_b"]
               + branches[2]["phi_inv_b"])                                   # (Cin,)
    cw = params["conv_w"]                                                    # (Cout, Cin)
    cwpi = jnp.einsum("oc,cm->om", cw, piw_all, precision="highest")         # (Cout, 3*mid)
    btot = (jnp.einsum("oc,c->o", cw, pib_sum, precision="highest")
            + params["conv_b"]).reshape(-1, 1)                               # (Cout, 1)
    return [wproj, bproj] + per_branch + [cw, cwpi, btot]


def mgcn_rgb_forward(x_nchw, params):
    """Full MGCN_rgb forward. Input/output in PyTorch NCHW layout."""
    bs, cin, h, w = x_nchw.shape
    hw = h * w
    x_flat = x_nchw.reshape(bs, cin, hw)           # (bs, C, HW): no transposes needed
    mid = params["glore1"]["phi_w"].shape[0]
    n_list = (params["glore1"]["theta_w"].shape[0],
              params["glore2"]["theta_w"].shape[0],
              params["glore3"]["theta_w"].shape[0])
    cout = params["conv_w"].shape[0]
    weights = _fused_weights(params)
    out = mgcn_rgb_pallas(x_flat, weights, mid, n_list, cout)   # (bs, Cout, HW)
    return out.reshape(bs, cout, h, w)


# ---------------------------------------------------------------------------
# Deterministic parameter initialization (PyTorch-default-style uniform)
# ---------------------------------------------------------------------------
def _uniform(key, shape, fan_in):
    bound = 1.0 / np.sqrt(fan_in)
    return jax.random.uniform(key, shape, jnp.float32, -bound, bound)


def init_mgcn_sub(key, cin, mid, n):
    ks = jax.random.split(key, 10)
    return {
        "theta_w": _uniform(ks[0], (n, cin), cin),
        "theta_b": _uniform(ks[1], (n,), cin),
        "phi_w": _uniform(ks[2], (mid, cin), cin),
        "phi_b": _uniform(ks[3], (mid,), cin),
        "w1": _uniform(ks[4], (n, n), n),
        "b1": _uniform(ks[5], (n,), n),
        "w2": _uniform(ks[6], (mid, mid), mid),
        "b2": _uniform(ks[7], (mid,), mid),
        "phi_inv_w": _uniform(ks[8], (cin, mid), mid),
        "phi_inv_b": _uniform(ks[9], (cin,), mid),
    }


def init_mgcn_rgb(key, cin, mid, cout, n):
    k1, k2, k3, k4, k5 = jax.random.split(key, 5)
    return {
        "glore1": init_mgcn_sub(k1, cin, mid, n),
        "glore2": init_mgcn_sub(k2, cin, mid, n // 2),
        "glore3": init_mgcn_sub(k3, cin, mid, n // 4),
        "conv_w": _uniform(k4, (cout, cin), cin),
        "conv_b": _uniform(k5, (cout,), cin),
    }


# ---------------------------------------------------------------------------
# Pure-JAX reference (direct transcription of the PyTorch forward, NCHW)
# ---------------------------------------------------------------------------
def _conv1x1_ref(x_nchw, w, b):
    return (jnp.einsum("oc,bchw->bohw", w, x_nchw, precision="highest")
            + b[None, :, None, None])


def _mgcn_sub_ref(x, p):
    bs, cin, h, w = x.shape
    hw = h * w
    Bm = _conv1x1_ref(x, p["theta_w"], p["theta_b"]).reshape(bs, -1, hw)          # (bs, N, hw)
    xr = _conv1x1_ref(x, p["phi_w"], p["phi_b"]).reshape(bs, -1, hw)
    xr = jnp.transpose(xr, (0, 2, 1))                                             # (bs, hw, mid)
    v = jnp.einsum("bnp,bpm->bnm", Bm, xr, precision="highest")                   # (bs, N, mid)
    h1 = jnp.einsum("oi,bim->bom", p["w1"], v, precision="highest") + p["b1"][None, :, None]
    hh = jnp.transpose(v - h1, (0, 2, 1))                                         # (bs, mid, N)
    zp = jnp.einsum("oi,bin->bon", p["w2"], hh, precision="highest") + p["b2"][None, :, None]
    z = jnp.transpose(zp, (0, 2, 1))                                              # (bs, N, mid)
    y = jnp.einsum("bnp,bnm->bpm", Bm, z, precision="highest")                    # (bs, hw, mid)
    y = jnp.transpose(y, (0, 2, 1)).reshape(bs, -1, h, w)
    return _conv1x1_ref(y, p["phi_inv_w"], p["phi_inv_b"])


def mgcn_rgb_ref(x, params):
    x1 = _mgcn_sub_ref(x, params["glore1"])
    x2 = _mgcn_sub_ref(x, params["glore2"])
    x3 = _mgcn_sub_ref(x, params["glore3"])
    xf = x + x1 + x2 + x3
    return _conv1x1_ref(xf, params["conv_w"], params["conv_b"])


# ---------------------------------------------------------------------------
if __name__ == "__main__":
    batch, in_channels, mid_channels, out_channels, N = 2, 4, 8, 4, 16
    h = w = 16

    key = jax.random.PRNGKey(0)
    k_x, k_p = jax.random.split(key)
    x = jax.random.normal(k_x, (batch, in_channels, h, w), dtype=jnp.float32)
    params = init_mgcn_rgb(k_p, in_channels, mid_channels, out_channels, N)

    out = jax.jit(mgcn_rgb_forward)(x, params)
    out = jax.block_until_ready(out)

    ref = jax.block_until_ready(mgcn_rgb_ref(x, params))
    np.testing.assert_allclose(np.asarray(out), np.asarray(ref), rtol=2e-2, atol=2e-2)

    print("KERNEL_OK")
</pallas_src>

<mosaic_0001>
module attributes {stable_mosaic.version = 11 : i64} {
  func.func @kernel(%arg0: i32, %arg1: memref<1x4x256xf32, #tpu.memory_space<vmem>>, %arg2: memref<52x4xf32, #tpu.memory_space<vmem>>, %arg3: memref<52x1xf32, #tpu.memory_space<vmem>>, %arg4: memref<16x16xf32, #tpu.memory_space<vmem>>, %arg5: memref<16x1xf32, #tpu.memory_space<vmem>>, %arg6: memref<8x8xf32, #tpu.memory_space<vmem>>, %arg7: memref<1x8xf32, #tpu.memory_space<vmem>>, %arg8: memref<8x8xf32, #tpu.memory_space<vmem>>, %arg9: memref<8x1xf32, #tpu.memory_space<vmem>>, %arg10: memref<8x8xf32, #tpu.memory_space<vmem>>, %arg11: memref<1x8xf32, #tpu.memory_space<vmem>>, %arg12: memref<4x4xf32, #tpu.memory_space<vmem>>, %arg13: memref<4x1xf32, #tpu.memory_space<vmem>>, %arg14: memref<8x8xf32, #tpu.memory_space<vmem>>, %arg15: memref<1x8xf32, #tpu.memory_space<vmem>>, %arg16: memref<4x4xf32, #tpu.memory_space<vmem>>, %arg17: memref<4x24xf32, #tpu.memory_space<vmem>>, %arg18: memref<4x1xf32, #tpu.memory_space<vmem>>, %arg19: memref<1x4x256xf32, #tpu.memory_space<vmem>>) attributes {dimension_semantics = [#tpu.dimension_semantics<parallel>], iteration_bounds = array<i64: 2>, scalar_prefetch = 0 : i64, scratch_operands = 0 : i64, tpu.core_type = #tpu.core_type<tc>, window_params = [{transform_indices = @transform_0, window_bounds = array<i64: 1, 4, 256>}, {pipeline_mode = #tpu.pipeline_mode<synchronous>, transform_indices = @transform_1, window_bounds = array<i64: 52, 4>}, {pipeline_mode = #tpu.pipeline_mode<synchronous>, transform_indices = @transform_2, window_bounds = array<i64: 52, 1>}, {pipeline_mode = #tpu.pipeline_mode<synchronous>, transform_indices = @transform_3, window_bounds = array<i64: 16, 16>}, {pipeline_mode = #tpu.pipeline_mode<synchronous>, transform_indices = @transform_4, window_bounds = array<i64: 16, 1>}, {pipeline_mode = #tpu.pipeline_mode<synchronous>, transform_indices = @transform_5, window_bounds = array<i64: 8, 8>}, {pipeline_mode = #tpu.pipeline_mode<synchronous>, transform_indices = @transform_6, window_bounds = array<i64: 1, 8>}, {pipeline_mode = #tpu.pipeline_mode<synchronous>, transform_indices = @transform_7, window_bounds = array<i64: 8, 8>}, {pipeline_mode = #tpu.pipeline_mode<synchronous>, transform_indices = @transform_8, window_bounds = array<i64: 8, 1>}, {pipeline_mode = #tpu.pipeline_mode<synchronous>, transform_indices = @transform_9, window_bounds = array<i64: 8, 8>}, {pipeline_mode = #tpu.pipeline_mode<synchronous>, transform_indices = @transform_10, window_bounds = array<i64: 1, 8>}, {pipeline_mode = #tpu.pipeline_mode<synchronous>, transform_indices = @transform_11, window_bounds = array<i64: 4, 4>}, {pipeline_mode = #tpu.pipeline_mode<synchronous>, transform_indices = @transform_12, window_bounds = array<i64: 4, 1>}, {pipeline_mode = #tpu.pipeline_mode<synchronous>, transform_indices = @transform_13, window_bounds = array<i64: 8, 8>}, {pipeline_mode = #tpu.pipeline_mode<synchronous>, transform_indices = @transform_14, window_bounds = array<i64: 1, 8>}, {pipeline_mode = #tpu.pipeline_mode<synchronous>, transform_indices = @transform_15, window_bounds = array<i64: 4, 4>}, {pipeline_mode = #tpu.pipeline_mode<synchronous>, transform_indices = @transform_16, window_bounds = array<i64: 4, 24>}, {pipeline_mode = #tpu.pipeline_mode<synchronous>, transform_indices = @transform_17, window_bounds = array<i64: 4, 1>}, {transform_indices = @transform_18, window_bounds = array<i64: 1, 4, 256>}]} {
    %c0 = arith.constant 0 : index
    %c0_0 = arith.constant 0 : index
    %c0_1 = arith.constant 0 : index
    %0 = vector.load %arg1[%c0, %c0_0, %c0_1] : memref<1x4x256xf32, #tpu.memory_space<vmem>>, vector<1x4x256xf32>
    %1 = vector.shape_cast %0 : vector<1x4x256xf32> to vector<4x256xf32>
    %c0_2 = arith.constant 0 : index
    %c0_3 = arith.constant 0 : index
    %2 = vector.load %arg16[%c0_2, %c0_3] : memref<4x4xf32, #tpu.memory_space<vmem>>, vector<4x4xf32>
    %cst = arith.constant dense<0.000000e+00> : vector<4x256xf32>
    %3 = tpu.matmul %2, %1, %cst {dimension_numbers = #tpu.dot_dimension_numbers<[1], [0], [0], [1], [0, 0, 1, 1], [], []>} : vector<4x4xf32>, vector<4x256xf32>, vector<4x256xf32> -> vector<4x256xf32>
    %c0_4 = arith.constant 0 : index
    %c0_5 = arith.constant 0 : index
    %4 = vector.load %arg2[%c0_4, %c0_5] : memref<52x4xf32, #tpu.memory_space<vmem>>, vector<52x4xf32>
    %cst_6 = arith.constant dense<0.000000e+00> : vector<52x256xf32>
    %5 = tpu.matmul %4, %1, %cst_6 {dimension_numbers = #tpu.dot_dimension_numbers<[1], [0], [0], [1], [0, 0, 1, 1], [], []>} : vector<52x4xf32>, vector<4x256xf32>, vector<52x256xf32> -> vector<52x256xf32>
    %c0_7 = arith.constant 0 : index
    %c0_8 = arith.constant 0 : index
    %6 = vector.load %arg3[%c0_7, %c0_8] : memref<52x1xf32, #tpu.memory_space<vmem>>, vector<52x1xf32>
    %7 = vector.broadcast %6 : vector<52x1xf32> to vector<52x256xf32>
    %8 = arith.addf %5, %7 : vector<52x256xf32>
    %9 = vector.extract_strided_slice %8 {offsets = [24, 0], sizes = [16, 256], strides = [1, 1]} : vector<52x256xf32> to vector<16x256xf32>
    %10 = vector.extract_strided_slice %8 {offsets = [0, 0], sizes = [8, 256], strides = [1, 1]} : vector<52x256xf32> to vector<8x256xf32>
    %cst_9 = arith.constant dense<0.000000e+00> : vector<16x8xf32>
    %11 = tpu.matmul %9, %10, %cst_9 {dimension_numbers = #tpu.dot_dimension_numbers<[1], [1], [0], [0], [0, 0, 1, 0], [], []>} : vector<16x256xf32>, vector<8x256xf32>, vector<16x8xf32> -> vector<16x8xf32>
    %c0_10 = arith.constant 0 : index
    %c0_11 = arith.constant 0 : index
    %12 = vector.load %arg4[%c0_10, %c0_11] : memref<16x16xf32, #tpu.memory_space<vmem>>, vector<16x16xf32>
    %cst_12 = arith.constant dense<0.000000e+00> : vector<16x8xf32>
    %13 = tpu.matmul %12, %11, %cst_12 {dimension_numbers = #tpu.dot_dimension_numbers<[1], [0], [0], [1], [0, 0, 1, 1], [], []>} : vector<16x16xf32>, vector<16x8xf32>, vector<16x8xf32> -> vector<16x8xf32>
    %c0_13 = arith.constant 0 : index
    %c0_14 = arith.constant 0 : index
    %14 = vector.load %arg5[%c0_13, %c0_14] : memref<16x1xf32, #tpu.memory_space<vmem>>, vector<16x1xf32>
    %15 = vector.broadcast %14 : vector<16x1xf32> to vector<16x8xf32>
    %16 = arith.addf %13, %15 : vector<16x8xf32>
    %17 = arith.subf %11, %16 : vector<16x8xf32>
    %c0_15 = arith.constant 0 : index
    %c0_16 = arith.constant 0 : index
    %18 = vector.load %arg6[%c0_15, %c0_16] : memref<8x8xf32, #tpu.memory_space<vmem>>, vector<8x8xf32>
    %cst_17 = arith.constant dense<0.000000e+00> : vector<16x8xf32>
    %19 = tpu.matmul %17, %18, %cst_17 {dimension_numbers = #tpu.dot_dimension_numbers<[1], [0], [0], [1], [0, 0, 1, 1], [], []>} : vector<16x8xf32>, vector<8x8xf32>, vector<16x8xf32> -> vector<16x8xf32>
    %c0_18 = arith.constant 0 : index
    %c0_19 = arith.constant 0 : index
    %20 = vector.load %arg7[%c0_18, %c0_19] : memref<1x8xf32, #tpu.memory_space<vmem>>, vector<1x8xf32>
    %21 = vector.broadcast %20 : vector<1x8xf32> to vector<16x8xf32>
    %22 = arith.addf %19, %21 : vector<16x8xf32>
    %cst_20 = arith.constant dense<0.000000e+00> : vector<8x256xf32>
    %23 = tpu.matmul %22, %9, %cst_20 {dimension_numbers = #tpu.dot_dimension_numbers<[0], [0], [1], [1], [0, 1, 1, 1], [], []>} : vector<16x8xf32>, vector<16x256xf32>, vector<8x256xf32> -> vector<8x256xf32>
    %24 = vector.extract_strided_slice %8 {offsets = [40, 0], sizes = [8, 256], strides = [1, 1]} : vector<52x256xf32> to vector<8x256xf32>
    %25 = vector.extract_strided_slice %8 {offsets = [8, 0], sizes = [8, 256], strides = [1, 1]} : vector<52x256xf32> to vector<8x256xf32>
    %cst_21 = arith.constant dense<0.000000e+00> : vector<8x8xf32>
    %26 = tpu.matmul %24, %25, %cst_21 {dimension_numbers = #tpu.dot_dimension_numbers<[1], [1], [0], [0], [0, 0, 1, 0], [], []>} : vector<8x256xf32>, vector<8x256xf32>, vector<8x8xf32> -> vector<8x8xf32>
    %c0_22 = arith.constant 0 : index
    %c0_23 = arith.constant 0 : index
    %27 = vector.load %arg8[%c0_22, %c0_23] : memref<8x8xf32, #tpu.memory_space<vmem>>, vector<8x8xf32>
    %cst_24 = arith.constant dense<0.000000e+00> : vector<8x8xf32>
    %28 = tpu.matmul %27, %26, %cst_24 {dimension_numbers = #tpu.dot_dimension_numbers<[1], [0], [0], [1], [0, 0, 1, 1], [], []>} : vector<8x8xf32>, vector<8x8xf32>, vector<8x8xf32> -> vector<8x8xf32>
    %c0_25 = arith.constant 0 : index
    %c0_26 = arith.constant 0 : index
    %29 = vector.load %arg9[%c0_25, %c0_26] : memref<8x1xf32, #tpu.memory_space<vmem>>, vector<8x1xf32>
    %30 = vector.broadcast %29 : vector<8x1xf32> to vector<8x8xf32>
    %31 = arith.addf %28, %30 : vector<8x8xf32>
    %32 = arith.subf %26, %31 : vector<8x8xf32>
    %c0_27 = arith.constant 0 : index
    %c0_28 = arith.constant 0 : index
    %33 = vector.load %arg10[%c0_27, %c0_28] : memref<8x8xf32, #tpu.memory_space<vmem>>, vector<8x8xf32>
    %cst_29 = arith.constant dense<0.000000e+00> : vector<8x8xf32>
    %34 = tpu.matmul %32, %33, %cst_29 {dimension_numbers = #tpu.dot_dimension_numbers<[1], [0], [0], [1], [0, 0, 1, 1], [], []>} : vector<8x8xf32>, vector<8x8xf32>, vector<8x8xf32> -> vector<8x8xf32>
    %c0_30 = arith.constant 0 : index
    %c0_31 = arith.constant 0 : index
    %35 = vector.load %arg11[%c0_30, %c0_31] : memref<1x8xf32, #tpu.memory_space<vmem>>, vector<1x8xf32>
    %36 = vector.broadcast %35 : vector<1x8xf32> to vector<8x8xf32>
    %37 = arith.addf %34, %36 : vector<8x8xf32>
    %cst_32 = arith.constant dense<0.000000e+00> : vector<8x256xf32>
    %38 = tpu.matmul %37, %24, %cst_32 {dimension_numbers = #tpu.dot_dimension_numbers<[0], [0], [1], [1], [0, 1, 1, 1], [], []>} : vector<8x8xf32>, vector<8x256xf32>, vector<8x256xf32> -> vector<8x256xf32>
    %39 = vector.extract_strided_slice %8 {offsets = [48, 0], sizes = [4, 256], strides = [1, 1]} : vector<52x256xf32> to vector<4x256xf32>
    %40 = vector.extract_strided_slice %8 {offsets = [16, 0], sizes = [8, 256], strides = [1, 1]} : vector<52x256xf32> to vector<8x256xf32>
    %cst_33 = arith.constant dense<0.000000e+00> : vector<4x8xf32>
    %41 = tpu.matmul %39, %40, %cst_33 {dimension_numbers = #tpu.dot_dimension_numbers<[1], [1], [0], [0], [0, 0, 1, 0], [], []>} : vector<4x256xf32>, vector<8x256xf32>, vector<4x8xf32> -> vector<4x8xf32>
    %c0_34 = arith.constant 0 : index
    %c0_35 = arith.constant 0 : index
    %42 = vector.load %arg12[%c0_34, %c0_35] : memref<4x4xf32, #tpu.memory_space<vmem>>, vector<4x4xf32>
    %cst_36 = arith.constant dense<0.000000e+00> : vector<4x8xf32>
    %43 = tpu.matmul %42, %41, %cst_36 {dimension_numbers = #tpu.dot_dimension_numbers<[1], [0], [0], [1], [0, 0, 1, 1], [], []>} : vector<4x4xf32>, vector<4x8xf32>, vector<4x8xf32> -> vector<4x8xf32>
    %c0_37 = arith.constant 0 : index
    %c0_38 = arith.constant 0 : index
    %44 = vector.load %arg13[%c0_37, %c0_38] : memref<4x1xf32, #tpu.memory_space<vmem>>, vector<4x1xf32>
    %45 = vector.broadcast %44 : vector<4x1xf32> to vector<4x8xf32>
    %46 = arith.addf %43, %45 : vector<4x8xf32>
    %47 = arith.subf %41, %46 : vector<4x8xf32>
    %c0_39 = arith.constant 0 : index
    %c0_40 = arith.constant 0 : index
    %48 = vector.load %arg14[%c0_39, %c0_40] : memref<8x8xf32, #tpu.memory_space<vmem>>, vector<8x8xf32>
    %cst_41 = arith.constant dense<0.000000e+00> : vector<4x8xf32>
    %49 = tpu.matmul %47, %48, %cst_41 {dimension_numbers = #tpu.dot_dimension_numbers<[1], [0], [0], [1], [0, 0, 1, 1], [], []>} : vector<4x8xf32>, vector<8x8xf32>, vector<4x8xf32> -> vector<4x8xf32>
    %c0_42 = arith.constant 0 : index
    %c0_43 = arith.constant 0 : index
    %50 = vector.load %arg15[%c0_42, %c0_43] : memref<1x8xf32, #tpu.memory_space<vmem>>, vector<1x8xf32>
    %51 = vector.broadcast %50 : vector<1x8xf32> to vector<4x8xf32>
    %52 = arith.addf %49, %51 : vector<4x8xf32>
    %cst_44 = arith.constant dense<0.000000e+00> : vector<8x256xf32>
    %53 = tpu.matmul %52, %39, %cst_44 {dimension_numbers = #tpu.dot_dimension_numbers<[0], [0], [1], [1], [0, 1, 1, 1], [], []>} : vector<4x8xf32>, vector<4x256xf32>, vector<8x256xf32> -> vector<8x256xf32>
    %54 = tpu.concatenate %23, %38, %53 in 0 : vector<8x256xf32>, vector<8x256xf32>, vector<8x256xf32> -> vector<24x256xf32>
    %c0_45 = arith.constant 0 : index
    %c0_46 = arith.constant 0 : index
    %55 = vector.load %arg17[%c0_45, %c0_46] : memref<4x24xf32, #tpu.memory_space<vmem>>, vector<4x24xf32>
    %cst_47 = arith.constant dense<0.000000e+00> : vector<4x256xf32>
    %56 = tpu.matmul %55, %54, %cst_47 {dimension_numbers = #tpu.dot_dimension_numbers<[1], [0], [0], [1], [0, 0, 1, 1], [], []>} : vector<4x24xf32>, vector<24x256xf32>, vector<4x256xf32> -> vector<4x256xf32>
    %57 = arith.addf %3, %56 : vector<4x256xf32>
    %c0_48 = arith.constant 0 : index
    %c0_49 = arith.constant 0 : index
    %58 = vector.load %arg18[%c0_48, %c0_49] : memref<4x1xf32, #tpu.memory_space<vmem>>, vector<4x1xf32>
    %59 = vector.broadcast %58 : vector<4x1xf32> to vector<4x256xf32>
    %60 = arith.addf %57, %59 : vector<4x256xf32>
    %c0_50 = arith.constant 0 : index
    %c0_51 = arith.constant 0 : index
    %c0_52 = arith.constant 0 : index
    %61 = vector.load %arg19[%c0_50, %c0_51, %c0_52] : memref<1x4x256xf32, #tpu.memory_space<vmem>>, vector<1x4x256xf32>
    %62 = vector.shape_cast %61 : vector<1x4x256xf32> to vector<4x256xf32>
    %63 = vector.shape_cast %60 : vector<4x256xf32> to vector<1x4x256xf32>
    tpu.vector_store %arg19[%c0_50, %c0_51, %c0_52], %63 {strides = array<i32>} : memref<1x4x256xf32, #tpu.memory_space<vmem>>, vector<1x4x256xf32>,
    return
  }
  func.func @transform_0(%arg0: i32) -> (i32, i32, i32) {
    %c0_i32 = arith.constant 0 : i32
    %c0_i32_0 = arith.constant 0 : i32
    %c0_i32_1 = arith.constant 0 : i32
    return %arg0, %c0_i32, %c0_i32_0 : i32, i32, i32
  }
  func.func @transform_1(%arg0: i32) -> (i32, i32) {
    %c0_i32 = arith.constant 0 : i32
    %c0_i32_0 = arith.constant 0 : i32
    %c0_i32_1 = arith.constant 0 : i32
    return %c0_i32, %c0_i32_0 : i32, i32
  }
  func.func @transform_2(%arg0: i32) -> (i32, i32) {
    %c0_i32 = arith.constant 0 : i32
    %c0_i32_0 = arith.constant 0 : i32
    %c0_i32_1 = arith.constant 0 : i32
    return %c0_i32, %c0_i32_0 : i32, i32
  }
  func.func @transform_3(%arg0: i32) -> (i32, i32) {
    %c0_i32 = arith.constant 0 : i32
    %c0_i32_0 = arith.constant 0 : i32
    %c0_i32_1 = arith.constant 0 : i32
    return %c0_i32, %c0_i32_0 : i32, i32
  }
  func.func @transform_4(%arg0: i32) -> (i32, i32) {
    %c0_i32 = arith.constant 0 : i32
    %c0_i32_0 = arith.constant 0 : i32
    %c0_i32_1 = arith.constant 0 : i32
    return %c0_i32, %c0_i32_0 : i32, i32
  }
  func.func @transform_5(%arg0: i32) -> (i32, i32) {
    %c0_i32 = arith.constant 0 : i32
    %c0_i32_0 = arith.constant 0 : i32
    %c0_i32_1 = arith.constant 0 : i32
    return %c0_i32, %c0_i32_0 : i32, i32
  }
  func.func @transform_6(%arg0: i32) -> (i32, i32) {
    %c0_i32 = arith.constant 0 : i32
    %c0_i32_0 = arith.constant 0 : i32
    %c0_i32_1 = arith.constant 0 : i32
    return %c0_i32, %c0_i32_0 : i32, i32
  }
  func.func @transform_7(%arg0: i32) -> (i32, i32) {
    %c0_i32 = arith.constant 0 : i32
    %c0_i32_0 = arith.constant 0 : i32
    %c0_i32_1 = arith.constant 0 : i32
    return %c0_i32, %c0_i32_0 : i32, i32
  }
  func.func @transform_8(%arg0: i32) -> (i32, i32) {
    %c0_i32 = arith.constant 0 : i32
    %c0_i32_0 = arith.constant 0 : i32
    %c0_i32_1 = arith.constant 0 : i32
    return %c0_i32, %c0_i32_0 : i32, i32
  }
  func.func @transform_9(%arg0: i32) -> (i32, i32) {
    %c0_i32 = arith.constant 0 : i32
    %c0_i32_0 = arith.constant 0 : i32
    %c0_i32_1 = arith.constant 0 : i32
    return %c0_i32, %c0_i32_0 : i32, i32
  }
  func.func @transform_10(%arg0: i32) -> (i32, i32) {
    %c0_i32 = arith.constant 0 : i32
    %c0_i32_0 = arith.constant 0 : i32
    %c0_i32_1 = arith.constant 0 : i32
    return %c0_i32, %c0_i32_0 : i32, i32
  }
  func.func @transform_11(%arg0: i32) -> (i32, i32) {
    %c0_i32 = arith.constant 0 : i32
    %c0_i32_0 = arith.constant 0 : i32
    %c0_i32_1 = arith.constant 0 : i32
    return %c0_i32, %c0_i32_0 : i32, i32
  }
  func.func @transform_12(%arg0: i32) -> (i32, i32) {
    %c0_i32 = arith.constant 0 : i32
    %c0_i32_0 = arith.constant 0 : i32
    %c0_i32_1 = arith.constant 0 : i32
    return %c0_i32, %c0_i32_0 : i32, i32
  }
  func.func @transform_13(%arg0: i32) -> (i32, i32) {
    %c0_i32 = arith.constant 0 : i32
    %c0_i32_0 = arith.constant 0 : i32
    %c0_i32_1 = arith.constant 0 : i32
    return %c0_i32, %c0_i32_0 : i32, i32
  }
  func.func @transform_14(%arg0: i32) -> (i32, i32) {
    %c0_i32 = arith.constant 0 : i32
    %c0_i32_0 = arith.constant 0 : i32
    %c0_i32_1 = arith.constant 0 : i32
    return %c0_i32, %c0_i32_0 : i32, i32
  }
  func.func @transform_15(%arg0: i32) -> (i32, i32) {
    %c0_i32 = arith.constant 0 : i32
    %c0_i32_0 = arith.constant 0 : i32
    %c0_i32_1 = arith.constant 0 : i32
    return %c0_i32, %c0_i32_0 : i32, i32
  }
  func.func @transform_16(%arg0: i32) -> (i32, i32) {
    %c0_i32 = arith.constant 0 : i32
    %c0_i32_0 = arith.constant 0 : i32
    %c0_i32_1 = arith.constant 0 : i32
    return %c0_i32, %c0_i32_0 : i32, i32
  }
  func.func @transform_17(%arg0: i32) -> (i32, i32) {
    %c0_i32 = arith.constant 0 : i32
    %c0_i32_0 = arith.constant 0 : i32
    %c0_i32_1 = arith.constant 0 : i32
    return %c0_i32, %c0_i32_0 : i32, i32
  }
  func.func @transform_18(%arg0: i32) -> (i32, i32, i32) {
    %c0_i32 = arith.constant 0 : i32
    %c0_i32_0 = arith.constant 0 : i32
    %c0_i32_1 = arith.constant 0 : i32
    return %arg0, %c0_i32, %c0_i32_0 : i32, i32, i32
  }
}

</mosaic_0001>

<llo_original>
// kernel: mgcn_rgb_forward.1
$region0: #{mgcn_rgb_forward.1}
  #allocation0 [shape = 'u32[]', space=smem, size = 0x4, offset = 0x4, fixed_abs, tag = 'smem constant byte address 0x4 - core index']
  #allocation1 [shape = 'u32[72,128]{1,0:T(1,128)}', space=vmem, size = 0x9000, scoped, tag = 'internal scratch']
  %s0 = inlined_call_operand.vmem [shape: f32[2,4,256], index: 0, kind: input, shape index: {}]
  %s1 = inlined_call_operand.vmem [shape: f32[52,4], index: 1, kind: input, shape index: {}]
  %s2 = inlined_call_operand.vmem [shape: f32[52,1], index: 2, kind: input, shape index: {}]
  %s3 = inlined_call_operand.vmem [shape: f32[16,16], index: 3, kind: input, shape index: {}]
  %s4 = inlined_call_operand.vmem [shape: f32[16,1], index: 4, kind: input, shape index: {}]
  %s5 = inlined_call_operand.vmem [shape: f32[8,8], index: 5, kind: input, shape index: {}]
  %s6 = inlined_call_operand.vmem [shape: f32[1,8], index: 6, kind: input, shape index: {}]
  %s7 = inlined_call_operand.vmem [shape: f32[8,8], index: 7, kind: input, shape index: {}]
  %s8 = inlined_call_operand.vmem [shape: f32[8,1], index: 8, kind: input, shape index: {}]
  %s9 = inlined_call_operand.vmem [shape: f32[8,8], index: 9, kind: input, shape index: {}]
  %s10 = inlined_call_operand.vmem [shape: f32[1,8], index: 10, kind: input, shape index: {}]
  %s11 = inlined_call_operand.vmem [shape: f32[4,4], index: 11, kind: input, shape index: {}]
  %s12 = inlined_call_operand.vmem [shape: f32[4,1], index: 12, kind: input, shape index: {}]
  %s13 = inlined_call_operand.vmem [shape: f32[8,8], index: 13, kind: input, shape index: {}]
  %s14 = inlined_call_operand.vmem [shape: f32[1,8], index: 14, kind: input, shape index: {}]
  %s15 = inlined_call_operand.vmem [shape: f32[4,4], index: 15, kind: input, shape index: {}]
  %s16 = inlined_call_operand.vmem [shape: f32[4,24], index: 16, kind: input, shape index: {}]
  %s17 = inlined_call_operand.vmem [shape: f32[4,1], index: 17, kind: input, shape index: {}]
  %s18 = inlined_call_operand.vmem [shape: f32[2,4,256], index: 18, kind: output, shape index: {}]
  %s19 = sld [smem:[#allocation0]]
  $region105: #{mgcn_rgb_forward.1} parent=0
    _
  %s21 = ssub.s32 1, %s19
  %s22 = scalar_select 0, %s21, %s19
  loop: start=0, step=1, limit=4
  $region2: #{mgcn_rgb_forward.1} parent=0 // loop_pre_header
    _
  $region3: #{mgcn_rgb_forward.1} parent=0 // loop_header
    %s24 = sphi 0, %s28
    %p25 = scmp.ge.s32.totalorder %s24, 4
    %s34 = sphi 0, %s36
    %s37 = sphi 0, %s34
    %s38 = sphi 0, %s37
    %s54 = sphi 0, %s38
    %s58 = sphi 0, %s58
    %s60 = sphi 0, %s58
    %s61 = sphi 0, %s60
    %s75 = sphi 0, %s61
    %s79 = sphi 0, %s79
    %s81 = sphi 0, %s79
    %s82 = sphi 0, %s81
    %s96 = sphi 0, %s82
    %s100 = sphi 0, %s100
    %s102 = sphi 0, %s100
    %s103 = sphi 0, %s102
    %s117 = sphi 0, %s103
    %s121 = sphi 0, %s121
    %s123 = sphi 0, %s121
    %s124 = sphi 0, %s123
    %s138 = sphi 0, %s124
    %s142 = sphi 0, %s142
    %s144 = sphi 0, %s142
    %s145 = sphi 0, %s144
    %s159 = sphi 0, %s145
    %s163 = sphi 0, %s163
    %s165 = sphi 0, %s163
    %s166 = sphi 0, %s165
    %s180 = sphi 0, %s166
    %s184 = sphi 0, %s184
    %s186 = sphi 0, %s184
    %s187 = sphi 0, %s186
    %s201 = sphi 0, %s187
    %s205 = sphi 0, %s205
    %s207 = sphi 0, %s205
    %s208 = sphi 0, %s207
    %s222 = sphi 0, %s208
    %s226 = sphi 0, %s226
    %s228 = sphi 0, %s226
    %s229 = sphi 0, %s228
    %s243 = sphi 0, %s229
    %s247 = sphi 0, %s247
    %s249 = sphi 0, %s247
    %s250 = sphi 0, %s249
    %s264 = sphi 0, %s250
    %s268 = sphi 0, %s268
    %s270 = sphi 0, %s268
    %s271 = sphi 0, %s270
    %s285 = sphi 0, %s271
    %s289 = sphi 0, %s289
    %s291 = sphi 0, %s289
    %s292 = sphi 0, %s291
    %s306 = sphi 0, %s292
    %s310 = sphi 0, %s310
    %s312 = sphi 0, %s310
    %s313 = sphi 0, %s312
    %s327 = sphi 0, %s313
    %s331 = sphi 0, %s331
    %s333 = sphi 0, %s331
    %s334 = sphi 0, %s333
    %s348 = sphi 0, %s334
    %s352 = sphi 0, %s352
    %s354 = sphi 0, %s352
    %s355 = sphi 0, %s354
    %s369 = sphi 0, %s355
    %s373 = sphi 0, %s373
    %s375 = sphi 0, %s373
    %s376 = sphi 0, %s375
    %s390 = sphi 0, %s376
    %s394 = sphi 0, %s394
    %s396 = sphi 0, %s394
    %s397 = sphi 0, %s396
    %s411 = sphi 0, %s397
    %s417 = sphi 0, %s419
    %s420 = sphi 0, %s417
    %s421 = sphi 0, %s420
    %s437 = sphi 0, %s421
  $region4: #{mgcn_rgb_forward.1} parent=0 // loop_header_branch
    %27 = sbr.rel (%p25) target = $region8
  $region5: #{mgcn_rgb_forward.1} parent=0 // loop_body
    %s29 = ssub.s32 %s24, 1
    %s30 = ssub.s32 %s24, 2
    %s31 = sadd.s32 %s24, 1
    %s32 = ssub.s32 %s24, %s31
    %p33 = scmp.eq.s32.totalorder %s32, 0
    %s35 = sadd.s32 %s34, 1
    %s36 = scalar_select %p33, %s34, %s35
    %p39 = pneg %p33
    %p40 = scmp.eq.s32.totalorder %s24, 1
    %p41 = por %p39, %p40
    %p42 = scmp.ne.s32.totalorder %s34, %s37
    %p43 = scmp.eq.s32.totalorder %s24, 0
    %p44 = por %p42, %p43
    %p45 = scmp.ne.s32.totalorder %s34, %s37
    %p46 = scmp.eq.s32.totalorder %s29, 1
    %p47 = por %p45, %p46
    %p48 = scmp.ne.s32.totalorder %s37, %s38
    %p49 = scmp.eq.s32.totalorder %s29, 0
    %p50 = por %p48, %p49
    %p51 = scmp.ne.s32.totalorder %s37, %s38
    %p52 = scmp.eq.s32.totalorder %s30, 1
    %p53 = por %p51, %p52
    %p55 = scmp.ne.s32.totalorder %s38, %s54
    %p56 = scmp.eq.s32.totalorder %s30, 0
    %p57 = por %p55, %p56
    %s59 = sadd.s32 %s58, 1
    %p62 = scmp.eq.s32.totalorder %s24, 1
    %p63 = scmp.ne.s32.totalorder %s58, %s60
    %p64 = scmp.eq.s32.totalorder %s24, 0
    %p65 = por %p63, %p64
    %p66 = scmp.ne.s32.totalorder %s58, %s60
    %p67 = scmp.eq.s32.totalorder %s29, 1
    %p68 = por %p66, %p67
    %p69 = scmp.ne.s32.totalorder %s60, %s61
    %p70 = scmp.eq.s32.totalorder %s29, 0
    %p71 = por %p69, %p70
    %p72 = scmp.ne.s32.totalorder %s60, %s61
    %p73 = scmp.eq.s32.totalorder %s30, 1
    %p74 = por %p72, %p73
    %p76 = scmp.ne.s32.totalorder %s61, %s75
    %p77 = scmp.eq.s32.totalorder %s30, 0
    %p78 = por %p76, %p77
    %s80 = sadd.s32 %s79, 1
    %p83 = scmp.eq.s32.totalorder %s24, 1
    %p84 = scmp.ne.s32.totalorder %s79, %s81
    %p85 = scmp.eq.s32.totalorder %s24, 0
    %p86 = por %p84, %p85
    %p87 = scmp.ne.s32.totalorder %s79, %s81
    %p88 = scmp.eq.s32.totalorder %s29, 1
    %p89 = por %p87, %p88
    %p90 = scmp.ne.s32.totalorder %s81, %s82
    %p91 = scmp.eq.s32.totalorder %s29, 0
    %p92 = por %p90, %p91
    %p93 = scmp.ne.s32.totalorder %s81, %s82
    %p94 = scmp.eq.s32.totalorder %s30, 1
    %p95 = por %p93, %p94
    %p97 = scmp.ne.s32.totalorder %s82, %s96
    %p98 = scmp.eq.s32.totalorder %s30, 0
    %p99 = por %p97, %p98
    %s101 = sadd.s32 %s100, 1
    %p104 = scmp.eq.s32.totalorder %s24, 1
    %p105 = scmp.ne.s32.totalorder %s100, %s102
    %p106 = scmp.eq.s32.totalorder %s24, 0
    %p107 = por %p105, %p106
    %p108 = scmp.ne.s32.totalorder %s100, %s102
    %p109 = scmp.eq.s32.totalorder %s29, 1
    %p110 = por %p108, %p109
    %p111 = scmp.ne.s32.totalorder %s102, %s103
    %p112 = scmp.eq.s32.totalorder %s29, 0
    %p113 = por %p111, %p112
    %p114 = scmp.ne.s32.totalorder %s102, %s103
    %p115 = scmp.eq.s32.totalorder %s30, 1
    %p116 = por %p114, %p115
    %p118 = scmp.ne.s32.totalorder %s103, %s117
    %p119 = scmp.eq.s32.totalorder %s30, 0
    %p120 = por %p118, %p119
    %s122 = sadd.s32 %s121, 1
    %p125 = scmp.eq.s32.totalorder %s24, 1
    %p126 = scmp.ne.s32.totalorder %s121, %s123
    %p127 = scmp.eq.s32.totalorder %s24, 0
    %p128 = por %p126, %p127
    %p129 = scmp.ne.s32.totalorder %s121, %s123
    %p130 = scmp.eq.s32.totalorder %s29, 1
    %p131 = por %p129, %p130
    %p132 = scmp.ne.s32.totalorder %s123, %s124
    %p133 = scmp.eq.s32.totalorder %s29, 0
    %p134 = por %p132, %p133
    %p135 = scmp.ne.s32.totalorder %s123, %s124
    %p136 = scmp.eq.s32.totalorder %s30, 1
    %p137 = por %p135, %p136
    %p139 = scmp.ne.s32.totalorder %s124, %s138
    %p140 = scmp.eq.s32.totalorder %s30, 0
    %p141 = por %p139, %p140
    %s143 = sadd.s32 %s142, 1
    %p146 = scmp.eq.s32.totalorder %s24, 1
    %p147 = scmp.ne.s32.totalorder %s142, %s144
    %p148 = scmp.eq.s32.totalorder %s24, 0
    %p149 = por %p147, %p148
    %p150 = scmp.ne.s32.totalorder %s142, %s144
    %p151 = scmp.eq.s32.totalorder %s29, 1
    %p152 = por %p150, %p151
    %p153 = scmp.ne.s32.totalorder %s144, %s145
    %p154 = scmp.eq.s32.totalorder %s29, 0
    %p155 = por %p153, %p154
    %p156 = scmp.ne.s32.totalorder %s144, %s145
    %p157 = scmp.eq.s32.totalorder %s30, 1
    %p158 = por %p156, %p157
    %p160 = scmp.ne.s32.totalorder %s145, %s159
    %p161 = scmp.eq.s32.totalorder %s30, 0
    %p162 = por %p160, %p161
    %s164 = sadd.s32 %s163, 1
    %p167 = scmp.eq.s32.totalorder %s24, 1
    %p168 = scmp.ne.s32.totalorder %s163, %s165
    %p169 = scmp.eq.s32.totalorder %s24, 0
    %p170 = por %p168, %p169
    %p171 = scmp.ne.s32.totalorder %s163, %s165
    %p172 = scmp.eq.s32.totalorder %s29, 1
    %p173 = por %p171, %p172
    %p174 = scmp.ne.s32.totalorder %s165, %s166
    %p175 = scmp.eq.s32.totalorder %s29, 0
    %p176 = por %p174, %p175
    %p177 = scmp.ne.s32.totalorder %s165, %s166
    %p178 = scmp.eq.s32.totalorder %s30, 1
    %p179 = por %p177, %p178
    %p181 = scmp.ne.s32.totalorder %s166, %s180
    %p182 = scmp.eq.s32.totalorder %s30, 0
    %p183 = por %p181, %p182
    %s185 = sadd.s32 %s184, 1
    %p188 = scmp.eq.s32.totalorder %s24, 1
    %p189 = scmp.ne.s32.totalorder %s184, %s186
    %p190 = scmp.eq.s32.totalorder %s24, 0
    %p191 = por %p189, %p190
    %p192 = scmp.ne.s32.totalorder %s184, %s186
    %p193 = scmp.eq.s32.totalorder %s29, 1
    %p194 = por %p192, %p193
    %p195 = scmp.ne.s32.totalorder %s186, %s187
    %p196 = scmp.eq.s32.totalorder %s29, 0
    %p197 = por %p195, %p196
    %p198 = scmp.ne.s32.totalorder %s186, %s187
    %p199 = scmp.eq.s32.totalorder %s30, 1
    %p200 = por %p198, %p199
    %p202 = scmp.ne.s32.totalorder %s187, %s201
    %p203 = scmp.eq.s32.totalorder %s30, 0
    %p204 = por %p202, %p203
    %s206 = sadd.s32 %s205, 1
    %p209 = scmp.eq.s32.totalorder %s24, 1
    %p210 = scmp.ne.s32.totalorder %s205, %s207
    %p211 = scmp.eq.s32.totalorder %s24, 0
    %p212 = por %p210, %p211
    %p213 = scmp.ne.s32.totalorder %s205, %s207
    %p214 = scmp.eq.s32.totalorder %s29, 1
    %p215 = por %p213, %p214
    %p216 = scmp.ne.s32.totalorder %s207, %s208
    %p217 = scmp.eq.s32.totalorder %s29, 0
    %p218 = por %p216, %p217
    %p219 = scmp.ne.s32.totalorder %s207, %s208
    %p220 = scmp.eq.s32.totalorder %s30, 1
    %p221 = por %p219, %p220
    %p223 = scmp.ne.s32.totalorder %s208, %s222
    %p224 = scmp.eq.s32.totalorder %s30, 0
    %p225 = por %p223, %p224
    %s227 = sadd.s32 %s226, 1
    %p230 = scmp.eq.s32.totalorder %s24, 1
    %p231 = scmp.ne.s32.totalorder %s226, %s228
    %p232 = scmp.eq.s32.totalorder %s24, 0
    %p233 = por %p231, %p232
    %p234 = scmp.ne.s32.totalorder %s226, %s228
    %p235 = scmp.eq.s32.totalorder %s29, 1
    %p236 = por %p234, %p235
    %p237 = scmp.ne.s32.totalorder %s228, %s229
    %p238 = scmp.eq.s32.totalorder %s29, 0
    %p239 = por %p237, %p238
    %p240 = scmp.ne.s32.totalorder %s228, %s229
    %p241 = scmp.eq.s32.totalorder %s30, 1
    %p242 = por %p240, %p241
    %p244 = scmp.ne.s32.totalorder %s229, %s243
    %p245 = scmp.eq.s32.totalorder %s30, 0
    %p246 = por %p244, %p245
    %s248 = sadd.s32 %s247, 1
    %p251 = scmp.eq.s32.totalorder %s24, 1
    %p252 = scmp.ne.s32.totalorder %s247, %s249
    %p253 = scmp.eq.s32.totalorder %s24, 0
    %p254 = por %p252, %p253
    %p255 = scmp.ne.s32.totalorder %s247, %s249
    %p256 = scmp.eq.s32.totalorder %s29, 1
    %p257 = por %p255, %p256
    %p258 = scmp.ne.s32.totalorder %s249, %s250
    %p259 = scmp.eq.s32.totalorder %s29, 0
    %p260 = por %p258, %p259
    %p261 = scmp.ne.s32.totalorder %s249, %s250
    %p262 = scmp.eq.s32.totalorder %s30, 1
    %p263 = por %p261, %p262
    %p265 = scmp.ne.s32.totalorder %s250, %s264
    %p266 = scmp.eq.s32.totalorder %s30, 0
    %p267 = por %p265, %p266
    %s269 = sadd.s32 %s268, 1
    %p272 = scmp.eq.s32.totalorder %s24, 1
    %p273 = scmp.ne.s32.totalorder %s268, %s270
    %p274 = scmp.eq.s32.totalorder %s24, 0
    %p275 = por %p273, %p274
    %p276 = scmp.ne.s32.totalorder %s268, %s270
    %p277 = scmp.eq.s32.totalorder %s29, 1
    %p278 = por %p276, %p277
    %p279 = scmp.ne.s32.totalorder %s270, %s271
    %p280 = scmp.eq.s32.totalorder %s29, 0
    %p281 = por %p279, %p280
    %p282 = scmp.ne.s32.totalorder %s270, %s271
    %p283 = scmp.eq.s32.totalorder %s30, 1
    %p284 = por %p282, %p283
    %p286 = scmp.ne.s32.totalorder %s271, %s285
    %p287 = scmp.eq.s32.totalorder %s30, 0
    %p288 = por %p286, %p287
    %s290 = sadd.s32 %s289, 1
    %p293 = scmp.eq.s32.totalorder %s24, 1
    %p294 = scmp.ne.s32.totalorder %s289, %s291
    %p295 = scmp.eq.s32.totalorder %s24, 0
    %p296 = por %p294, %p295
    %p297 = scmp.ne.s32.totalorder %s289, %s291
    %p298 = scmp.eq.s32.totalorder %s29, 1
    %p299 = por %p297, %p298
    %p300 = scmp.ne.s32.totalorder %s291, %s292
    %p301 = scmp.eq.s32.totalorder %s29, 0
    %p302 = por %p300, %p301
    %p303 = scmp.ne.s32.totalorder %s291, %s292
    %p304 = scmp.eq.s32.totalorder %s30, 1
    %p305 = por %p303, %p304
    %p307 = scmp.ne.s32.totalorder %s292, %s306
    %p308 = scmp.eq.s32.totalorder %s30, 0
    %p309 = por %p307, %p308
    %s311 = sadd.s32 %s310, 1
    %p314 = scmp.eq.s32.totalorder %s24, 1
    %p315 = scmp.ne.s32.totalorder %s310, %s312
    %p316 = scmp.eq.s32.totalorder %s24, 0
    %p317 = por %p315, %p316
    %p318 = scmp.ne.s32.totalorder %s310, %s312
    %p319 = scmp.eq.s32.totalorder %s29, 1
    %p320 = por %p318, %p319
    %p321 = scmp.ne.s32.totalorder %s312, %s313
    %p322 = scmp.eq.s32.totalorder %s29, 0
    %p323 = por %p321, %p322
    %p324 = scmp.ne.s32.totalorder %s312, %s313
    %p325 = scmp.eq.s32.totalorder %s30, 1
    %p326 = por %p324, %p325
    %p328 = scmp.ne.s32.totalorder %s313, %s327
    %p329 = scmp.eq.s32.totalorder %s30, 0
    %p330 = por %p328, %p329
    %s332 = sadd.s32 %s331, 1
    %p335 = scmp.eq.s32.totalorder %s24, 1
    %p336 = scmp.ne.s32.totalorder %s331, %s333
    %p337 = scmp.eq.s32.totalorder %s24, 0
    %p338 = por %p336, %p337
    %p339 = scmp.ne.s32.totalorder %s331, %s333
    %p340 = scmp.eq.s32.totalorder %s29, 1
    %p341 = por %p339, %p340
    %p342 = scmp.ne.s32.totalorder %s333, %s334
    %p343 = scmp.eq.s32.totalorder %s29, 0
    %p344 = por %p342, %p343
    %p345 = scmp.ne.s32.totalorder %s333, %s334
    %p346 = scmp.eq.s32.totalorder %s30, 1
    %p347 = por %p345, %p346
    %p349 = scmp.ne.s32.totalorder %s334, %s348
    %p350 = scmp.eq.s32.totalorder %s30, 0
    %p351 = por %p349, %p350
    %s353 = sadd.s32 %s352, 1
    %p356 = scmp.eq.s32.totalorder %s24, 1
    %p357 = scmp.ne.s32.totalorder %s352, %s354
    %p358 = scmp.eq.s32.totalorder %s24, 0
    %p359 = por %p357, %p358
    %p360 = scmp.ne.s32.totalorder %s352, %s354
    %p361 = scmp.eq.s32.totalorder %s29, 1
    %p362 = por %p360, %p361
    %p363 = scmp.ne.s32.totalorder %s354, %s355
    %p364 = scmp.eq.s32.totalorder %s29, 0
    %p365 = por %p363, %p364
    %p366 = scmp.ne.s32.totalorder %s354, %s355
    %p367 = scmp.eq.s32.totalorder %s30, 1
    %p368 = por %p366, %p367
    %p370 = scmp.ne.s32.totalorder %s355, %s369
    %p371 = scmp.eq.s32.totalorder %s30, 0
    %p372 = por %p370, %p371
    %s374 = sadd.s32 %s373, 1
    %p377 = scmp.eq.s32.totalorder %s24, 1
    %p378 = scmp.ne.s32.totalorder %s373, %s375
    %p379 = scmp.eq.s32.totalorder %s24, 0
    %p380 = por %p378, %p379
    %p381 = scmp.ne.s32.totalorder %s373, %s375
    %p382 = scmp.eq.s32.totalorder %s29, 1
    %p383 = por %p381, %p382
    %p384 = scmp.ne.s32.totalorder %s375, %s376
    %p385 = scmp.eq.s32.totalorder %s29, 0
    %p386 = por %p384, %p385
    %p387 = scmp.ne.s32.totalorder %s375, %s376
    %p388 = scmp.eq.s32.totalorder %s30, 1
    %p389 = por %p387, %p388
    %p391 = scmp.ne.s32.totalorder %s376, %s390
    %p392 = scmp.eq.s32.totalorder %s30, 0
    %p393 = por %p391, %p392
    %s395 = sadd.s32 %s394, 1
    %p398 = scmp.eq.s32.totalorder %s24, 1
    %p399 = scmp.ne.s32.totalorder %s394, %s396
    %p400 = scmp.eq.s32.totalorder %s24, 0
    %p401 = por %p399, %p400
    %p402 = scmp.ne.s32.totalorder %s394, %s396
    %p403 = scmp.eq.s32.totalorder %s29, 1
    %p404 = por %p402, %p403
    %p405 = scmp.ne.s32.totalorder %s396, %s397
    %p406 = scmp.eq.s32.totalorder %s29, 0
    %p407 = por %p405, %p406
    %p408 = scmp.ne.s32.totalorder %s396, %s397
    %p409 = scmp.eq.s32.totalorder %s30, 1
    %p410 = por %p408, %p409
    %p412 = scmp.ne.s32.totalorder %s397, %s411
    %p413 = scmp.eq.s32.totalorder %s30, 0
    %p414 = por %p412, %p413
    %s415 = ssub.s32 %s24, %s31
    %p416 = scmp.eq.s32.totalorder %s415, 0
    %s418 = sadd.s32 %s417, 1
    %s419 = scalar_select %p416, %s417, %s418
    %p422 = pneg %p416
    %p423 = scmp.eq.s32.totalorder %s24, 1
    %p424 = por %p422, %p423
    %p425 = scmp.ne.s32.totalorder %s417, %s420
    %p426 = scmp.eq.s32.totalorder %s24, 0
    %p427 = por %p425, %p426
    %p428 = scmp.ne.s32.totalorder %s417, %s420
    %p429 = scmp.eq.s32.totalorder %s29, 1
    %p430 = por %p428, %p429
    %p431 = scmp.ne.s32.totalorder %s420, %s421
    %p432 = scmp.eq.s32.totalorder %s29, 0
    %p433 = por %p431, %p432
    %p434 = scmp.ne.s32.totalorder %s420, %s421
    %p435 = scmp.eq.s32.totalorder %s30, 1
    %p436 = por %p434, %p435
    %p438 = scmp.ne.s32.totalorder %s421, %s437
    %p439 = scmp.eq.s32.totalorder %s30, 0
    %p440 = por %p438, %p439
    %p441 = scmp.le.s32.totalorder 1, %s24
    %p442 = scmp.lt.s32.totalorder %s24, 3
    %p443 = pnand %p441, %p442
    %p444 = pneg %p443
    // Predicated region
    $region9: #{mgcn_rgb_forward.1} parent=5 // pred_check
      _
    $region10: #{mgcn_rgb_forward.1} parent=5 // pred_check_branch
      %446 = sbr.rel (%p443) target = $region12
    $region11: #{mgcn_rgb_forward.1} parent=5 // pred_region
      %s447 = ssub.s32 %s24, 1
      // Predicated region
      $region13: #{mgcn_rgb_forward.1} parent=11 // pred_check
        %p448 = pneg %p71
      $region14: #{mgcn_rgb_forward.1} parent=11 // pred_check_branch
        %450 = sbr.rel (%p448) target = $region16
      $region15: #{mgcn_rgb_forward.1} parent=11 // pred_region
        _
      $region16: #{mgcn_rgb_forward.1} parent=11 // pred_fallthru
        _
      // Predicated region
      $region17: #{mgcn_rgb_forward.1} parent=11 // pred_check
        %p451 = pneg %p92
      $region18: #{mgcn_rgb_forward.1} parent=11 // pred_check_branch
        %453 = sbr.rel (%p451) target = $region20
      $region19: #{mgcn_rgb_forward.1} parent=11 // pred_region
        _
      $region20: #{mgcn_rgb_forward.1} parent=11 // pred_fallthru
        _
      // Predicated region
      $region21: #{mgcn_rgb_forward.1} parent=11 // pred_check
        %p454 = pneg %p113
      $region22: #{mgcn_rgb_forward.1} parent=11 // pred_check_branch
        %456 = sbr.rel (%p454) target = $region24
      $region23: #{mgcn_rgb_forward.1} parent=11 // pred_region
        _
      $region24: #{mgcn_rgb_forward.1} parent=11 // pred_fallthru
        _
      // Predicated region
      $region25: #{mgcn_rgb_forward.1} parent=11 // pred_check
        %p457 = pneg %p134
      $region26: #{mgcn_rgb_forward.1} parent=11 // pred_check_branch
        %459 = sbr.rel (%p457) target = $region28
      $region27: #{mgcn_rgb_forward.1} parent=11 // pred_region
        _
      $region28: #{mgcn_rgb_forward.1} parent=11 // pred_fallthru
        _
      // Predicated region
      $region29: #{mgcn_rgb_forward.1} parent=11 // pred_check
        %p460 = pneg %p155
      $region30: #{mgcn_rgb_forward.1} parent=11 // pred_check_branch
        %462 = sbr.rel (%p460) target = $region32
      $region31: #{mgcn_rgb_forward.1} parent=11 // pred_region
        _
      $region32: #{mgcn_rgb_forward.1} parent=11 // pred_fallthru
        _
      // Predicated region
      $region33: #{mgcn_rgb_forward.1} parent=11 // pred_check
        %p463 = pneg %p176
      $region34: #{mgcn_rgb_forward.1} parent=11 // pred_check_branch
        %465 = sbr.rel (%p463) target = $region36
      $region35: #{mgcn_rgb_forward.1} parent=11 // pred_region
        _
      $region36: #{mgcn_rgb_forward.1} parent=11 // pred_fallthru
        _
      // Predicated region
      $region37: #{mgcn_rgb_forward.1} parent=11 // pred_check
        %p466 = pneg %p197
      $region38: #{mgcn_rgb_forward.1} parent=11 // pred_check_branch
        %468 = sbr.rel (%p466) target = $region40
      $region39: #{mgcn_rgb_forward.1} parent=11 // pred_region
        _
      $region40: #{mgcn_rgb_forward.1} parent=11 // pred_fallthru
        _
      // Predicated region
      $region41: #{mgcn_rgb_forward.1} parent=11 // pred_check
        %p469 = pneg %p218
      $region42: #{mgcn_rgb_forward.1} parent=11 // pred_check_branch
        %471 = sbr.rel (%p469) target = $region44
      $region43: #{mgcn_rgb_forward.1} parent=11 // pred_region
        _
      $region44: #{mgcn_rgb_forward.1} parent=11 // pred_fallthru
        _
      // Predicated region
      $region45: #{mgcn_rgb_forward.1} parent=11 // pred_check
        %p472 = pneg %p239
      $region46: #{mgcn_rgb_forward.1} parent=11 // pred_check_branch
        %474 = sbr.rel (%p472) target = $region48
      $region47: #{mgcn_rgb_forward.1} parent=11 // pred_region
        _
      $region48: #{mgcn_rgb_forward.1} parent=11 // pred_fallthru
        _
      // Predicated region
      $region49: #{mgcn_rgb_forward.1} parent=11 // pred_check
        %p475 = pneg %p260
      $region50: #{mgcn_rgb_forward.1} parent=11 // pred_check_branch
        %477 = sbr.rel (%p475) target = $region52
      $region51: #{mgcn_rgb_forward.1} parent=11 // pred_region
        _
      $region52: #{mgcn_rgb_forward.1} parent=11 // pred_fallthru
        _
      // Predicated region
      $region53: #{mgcn_rgb_forward.1} parent=11 // pred_check
        %p478 = pneg %p281
      $region54: #{mgcn_rgb_forward.1} parent=11 // pred_check_branch
        %480 = sbr.rel (%p478) target = $region56
      $region55: #{mgcn_rgb_forward.1} parent=11 // pred_region
        _
      $region56: #{mgcn_rgb_forward.1} parent=11 // pred_fallthru
        _
      // Predicated region
      $region57: #{mgcn_rgb_forward.1} parent=11 // pred_check
        %p481 = pneg %p302
      $region58: #{mgcn_rgb_forward.1} parent=11 // pred_check_branch
        %483 = sbr.rel (%p481) target = $region60
      $region59: #{mgcn_rgb_forward.1} parent=11 // pred_region
        _
      $region60: #{mgcn_rgb_forward.1} parent=11 // pred_fallthru
        _
      // Predicated region
      $region61: #{mgcn_rgb_forward.1} parent=11 // pred_check
        %p484 = pneg %p323
      $region62: #{mgcn_rgb_forward.1} parent=11 // pred_check_branch
        %486 = sbr.rel (%p484) target = $region64
      $region63: #{mgcn_rgb_forward.1} parent=11 // pred_region
        _
      $region64: #{mgcn_rgb_forward.1} parent=11 // pred_fallthru
        _
      // Predicated region
      $region65: #{mgcn_rgb_forward.1} parent=11 // pred_check
        %p487 = pneg %p344
      $region66: #{mgcn_rgb_forward.1} parent=11 // pred_check_branch
        %489 = sbr.rel (%p487) target = $region68
      $region67: #{mgcn_rgb_forward.1} parent=11 // pred_region
        _
      $region68: #{mgcn_rgb_forward.1} parent=11 // pred_fallthru
        _
      // Predicated region
      $region69: #{mgcn_rgb_forward.1} parent=11 // pred_check
        %p490 = pneg %p365
      $region70: #{mgcn_rgb_forward.1} parent=11 // pred_check_branch
        %492 = sbr.rel (%p490) target = $region72
      $region71: #{mgcn_rgb_forward.1} parent=11 // pred_region
        _
      $region72: #{mgcn_rgb_forward.1} parent=11 // pred_fallthru
        _
      // Predicated region
      $region73: #{mgcn_rgb_forward.1} parent=11 // pred_check
        %p493 = pneg %p386
      $region74: #{mgcn_rgb_forward.1} parent=11 // pred_check_branch
        %495 = sbr.rel (%p493) target = $region76
      $region75: #{mgcn_rgb_forward.1} parent=11 // pred_region
        _
      $region76: #{mgcn_rgb_forward.1} parent=11 // pred_fallthru
        _
      // Predicated region
      $region77: #{mgcn_rgb_forward.1} parent=11 // pred_check
        %p496 = pneg %p407
      $region78: #{mgcn_rgb_forward.1} parent=11 // pred_check_branch
        %498 = sbr.rel (%p496) target = $region80
      $region79: #{mgcn_rgb_forward.1} parent=11 // pred_region
        _
      $region80: #{mgcn_rgb_forward.1} parent=11 // pred_fallthru
        _
    $region12: #{mgcn_rgb_forward.1} parent=5 // pred_fallthru
      _
    %p499 = scmp.lt.s32.totalorder %s24, 2
    // Predicated region
    $region81: #{mgcn_rgb_forward.1} parent=5 // pred_check
      %p500 = pneg %p499
    $region82: #{mgcn_rgb_forward.1} parent=5 // pred_check_branch
      %502 = sbr.rel (%p500) target = $region84
    $region83: #{mgcn_rgb_forward.1} parent=5 // pred_region
      // Predicated region
      $region85: #{mgcn_rgb_forward.1} parent=83 // pred_check
        %p503 = pneg %p44
      $region86: #{mgcn_rgb_forward.1} parent=83 // pred_check_branch
        %505 = sbr.rel (%p503) target = $region88
      $region87: #{mgcn_rgb_forward.1} parent=83 // pred_region
        %p506 = scmp.lt.s32.totalorder %s24, 1
        %s507 = scalar_select %p506, %s24, 1
        %s508 = smul.addr %s507, 2
        %s509 = smul.addr %s508, 4
        %s510 = scalar_lea.vmem %s0, %s509
      $region88: #{mgcn_rgb_forward.1} parent=83 // pred_fallthru
        _
    $region84: #{mgcn_rgb_forward.1} parent=5 // pred_fallthru
      _
    %p511 = scmp.le.s32.totalorder 1, %s24
    %p512 = scmp.lt.s32.totalorder %s24, 3
    %p513 = pnand %p511, %p512
    %p514 = pneg %p513
    // Predicated region
    $region89: #{mgcn_rgb_forward.1} parent=5 // pred_check
      _
    $region90: #{mgcn_rgb_forward.1} parent=5 // pred_check_branch
      %516 = sbr.rel (%p513) target = $region92
    $region91: #{mgcn_rgb_forward.1} parent=5 // pred_region
      %s517 = ssub.s32 %s24, 1
      %p518 = scmp.lt.s32.totalorder %s29, 1
      %s519 = scalar_select %p518, %s29, 1
      %s520 = smul.addr %s519, 2
      %s521 = smul.addr %s520, 4
      %s522 = scalar_lea.vmem %s0, %s521
      %p523 = pneg %p50
      %p524 = pneg %p47
      %p525 = pneg %p71
      %p526 = pneg %p68
      %p527 = pneg %p92
      %p528 = pneg %p89
      %p529 = pneg %p113
      %p530 = pneg %p110
      %p531 = pneg %p134
      %p532 = pneg %p131
      %p533 = pneg %p155
      %p534 = pneg %p152
      %p535 = pneg %p176
      %p536 = pneg %p173
      %p537 = pneg %p197
      %p538 = pneg %p194
      %p539 = pneg %p218
      %p540 = pneg %p215
      %p541 = pneg %p239
      %p542 = pneg %p236
      %p543 = pneg %p260
      %p544 = pneg %p257
      %p545 = pneg %p281
      %p546 = pneg %p278
      %p547 = pneg %p302
      %p548 = pneg %p299
      %p549 = pneg %p323
      %p550 = pneg %p320
      %p551 = pneg %p344
      %p552 = pneg %p341
      %p553 = pneg %p365
      %p554 = pneg %p362
      %p555 = pneg %p386
      %p556 = pneg %p383
      %p557 = pneg %p407
      %p558 = pneg %p404
      %p559 = pneg %p433
      %p560 = pneg %p430
      %p561 = scmp.lt.s32.totalorder %s29, 1
      %s562 = scalar_select %p561, %s29, 1
      %s563 = smul.addr %s562, 2
      %s564 = smul.addr %s563, 4
      %s565 = scalar_lea.vmem %s18, %s564
      %p566 = scmp.lt.s32.totalorder %s29, 1
      %s567 = scalar_select %p566, %s29, 1
      %s568 = smul.addr %s567, 2
      %s569 = smul.addr %s568, 4
      %s570 = scalar_lea.vmem %s0, %s569
      %p571 = scmp.lt.s32.totalorder %s29, 1
      %s572 = scalar_select %p571, %s29, 1
      %s573 = smul.addr %s572, 2
      %s574 = smul.addr %s573, 4
      %s575 = scalar_lea.vmem %s18, %s574
      %v576 = vld [vmem:[%s570] sm:$0xff]
      %v577 = vld [vmem:[%s15] sm:$0xf]
      %v578 = vld [vmem:[%s1] sm:$0xff]
      %v579 = vld [vmem:[%s1 + $0x8] sm:$0xff]
      %v580 = vld [vmem:[%s1 + $0x10] sm:$0xff]
      %v581 = vld [vmem:[%s1 + $0x18] sm:$0xff]
      %v582 = vld [vmem:[%s1 + $0x20] sm:$0xff]
      %v583 = vld [vmem:[%s1 + $0x28] sm:$0xff]
      %v584 = vld [vmem:[%s1 + $0x30] sm:$0xf]
      %v585 = vld [vmem:[%s2] sm:$0xff]
      %v586 = vld [vmem:[%s2 + $0x8] sm:$0xff]
      %v587 = vld [vmem:[%s2 + $0x10] sm:$0xff]
      %v588 = vld [vmem:[%s2 + $0x18] sm:$0xff]
      %v589 = vld [vmem:[%s2 + $0x20] sm:$0xff]
      %v590 = vld [vmem:[%s2 + $0x28] sm:$0xff]
      %v591 = vld [vmem:[%s2 + $0x30] sm:$0xf]
      %593 = vset.pattern.permute.xlu0 0
      %594 = vperm.xlu0 %593, %v585
      %v595 = vpop.permute.xlu0 %594
      %598 = vset.pattern.permute.xlu0 0
      %599 = vperm.xlu0 %598, %v586
      %v600 = vpop.permute.xlu0 %599
      %603 = vset.pattern.permute.xlu0 0
      %604 = vperm.xlu0 %603, %v587
      %v605 = vpop.permute.xlu0 %604
      %608 = vset.pattern.permute.xlu0 0
      %609 = vperm.xlu0 %608, %v588
      %v610 = vpop.permute.xlu0 %609
      %613 = vset.pattern.permute.xlu0 0
      %614 = vperm.xlu0 %613, %v589
      %v615 = vpop.permute.xlu0 %614
      %618 = vset.pattern.permute.xlu0 0
      %619 = vperm.xlu0 %618, %v590
      %v620 = vpop.permute.xlu0 %619
      %623 = vset.pattern.permute.xlu0 0
      %624 = vperm.xlu0 %623, %v591
      %v625 = vpop.permute.xlu0 %624
      %628 = vst [vmem:[#allocation1] ss:$2 sm:$0xff] %v576
      %v629 = vld.sshfl [vmem:[#allocation1] sm:$0xff pattern:$0x75316420]
      %v630 = vld.sshfl [vmem:[#allocation1 + $0x8] sm:$0xff pattern:$0x75316420]
      %vm631 = vcmask 31744
      %v633 = vsel %vm631, %v578, 0
      %v636 = vsel %vm631, %v579, 0
      %v639 = vsel %vm631, %v580, 0
      %v642 = vsel %vm631, %v581, 0
      %v645 = vsel %vm631, %v582, 0
      %v648 = vsel %vm631, %v583, 0
      %v651 = vsel %vm631, %v584, 0
      %vm653 = vcmask 1043456
      %v654 = vsel %vm653, %v629, 0
      %v656 = vsel %vm653, %v630, 0
      %658 = vmatpush.msra.mxu0 0.0
      %659 = vmatpush.msra.mxu0 0.0
      %660 = vmatpush.msra.mxu0 0.0
      %661 = vmatpush.msra.mxu0 0.0
      %662 = vmatpush.msra.mxu0 0.0
      %663 = vmatpush.msra.mxu0 0.0
      %664 = vmatpush.msra.mxu0 0.0
      %665 = vmatpush.msra.mxu0 0.0
      %666 = vmatpush.msra.mxu0 0.0
      %667 = vmatpush.msra.mxu0 0.0
      %668 = vmatpush.msra.mxu0 0.0
      %669 = vmatpush.msra.mxu0 0.0
      %670 = vmatpush.msra.mxu0 0.0
      %671 = vmatpush.msra.mxu0 0.0
      %672 = vmatpush.msra.mxu0 0.0
      %673 = vmatpush.msra.mxu0 %v654
      %674 = vmatmul.f32.gmra.mxu0 %v633
      %v675 = vpop.f32.mrf.mxu0
      %v676 = vadd.f32 %v595, %v675
      %677 = vmatmul.f32.gmra.mxu0 %v636
      %v678 = vpop.f32.mrf.mxu0
      %v679 = vadd.f32 %v600, %v678
      %680 = vmatmul.f32.gmra.mxu0 %v639
      %v681 = vpop.f32.mrf.mxu0
      %v682 = vadd.f32 %v605, %v681
      %683 = vmatmul.f32.gmra.mxu0 %v642
      %v684 = vpop.f32.mrf.mxu0
      %v685 = vadd.f32 %v610, %v684
      %686 = vmatmul.f32.gmra.mxu0 %v645
      %v687 = vpop.f32.mrf.mxu0
      %v688 = vadd.f32 %v615, %v687
      %689 = vmatmul.f32.gmra.mxu0 %v648
      %v690 = vpop.f32.mrf.mxu0
      %v691 = vadd.f32 %v620, %v690
      %692 = vmatmul.f32.gmra.mxu0 %v651
      %v693 = vpop.f32.mrf.mxu0
      %v694 = vadd.f32 %v625, %v693
      %695 = vdwg.mxu0
      %696 = vmatpush.msra.mxu0 0.0
      %697 = vmatpush.msra.mxu0 0.0
      %698 = vmatpush.msra.mxu0 0.0
      %699 = vmatpush.msra.mxu0 0.0
      %700 = vmatpush.msra.mxu0 0.0
      %701 = vmatpush.msra.mxu0 0.0
      %702 = vmatpush.msra.mxu0 0.0
      %703 = vmatpush.msra.mxu0 0.0
      %704 = vmatpush.msra.mxu0 0.0
      %705 = vmatpush.msra.mxu0 0.0
      %706 = vmatpush.msra.mxu0 0.0
      %707 = vmatpush.msra.mxu0 0.0
      %708 = vmatpush.msra.mxu0 0.0
      %709 = vmatpush.msra.mxu0 0.0
      %710 = vmatpush.msra.mxu0 0.0
      %711 = vmatpush.msra.mxu0 %v656
      %712 = vmatmul.f32.gmra.mxu0 %v633
      %v713 = vpop.f32.mrf.mxu0
      %v714 = vadd.f32 %v595, %v713
      %715 = vmatmul.f32.gmra.mxu0 %v636
      %v716 = vpop.f32.mrf.mxu0
      %v717 = vadd.f32 %v600, %v716
      %718 = vmatmul.f32.gmra.mxu0 %v639
      %v719 = vpop.f32.mrf.mxu0
      %v720 = vadd.f32 %v605, %v719
      %721 = vmatmul.f32.gmra.mxu0 %v642
      %v722 = vpop.f32.mrf.mxu0
      %v723 = vadd.f32 %v610, %v722
      %724 = vmatmul.f32.gmra.mxu0 %v645
      %v725 = vpop.f32.mrf.mxu0
      %v726 = vadd.f32 %v615, %v725
      %727 = vmatmul.f32.gmra.mxu0 %v648
      %v728 = vpop.f32.mrf.mxu0
      %v729 = vadd.f32 %v620, %v728
      %730 = vmatmul.f32.gmra.mxu0 %v651
      %v731 = vpop.f32.mrf.mxu0
      %v732 = vadd.f32 %v625, %v731
      %733 = vdwg.mxu0
      %734 = vmatpush.xpose.msra.mxu0 0.0
      %735 = vmatpush.xpose.msra.mxu0 0.0
      %736 = vmatpush.xpose.msra.mxu0 0.0
      %737 = vmatpush.xpose.msra.mxu0 0.0
      %738 = vmatpush.xpose.msra.mxu0 0.0
      %739 = vmatpush.xpose.msra.mxu0 0.0
      %740 = vmatpush.xpose.msra.mxu0 0.0
      %741 = vmatpush.xpose.msra.mxu0 0.0
      %742 = vmatpush.xpose.msra.mxu0 0.0
      %743 = vmatpush.xpose.msra.mxu0 0.0
      %744 = vmatpush.xpose.msra.mxu0 0.0
      %745 = vmatpush.xpose.msra.mxu0 0.0
      %746 = vmatpush.xpose.msra.mxu0 0.0
      %747 = vmatpush.xpose.msra.mxu0 0.0
      %748 = vmatpush.xpose.msra.mxu0 0.0
      %749 = vmatpush.xpose.msra.mxu0 %v676
      %750 = vmatmul.f32.gmra.mxu0 %v685
      %v751 = vpop.f32.mrf.mxu0
      %v752 = vadd.f32 0.0, %v751
      %753 = vmatmul.f32.gmra.mxu0 %v688
      %v754 = vpop.f32.mrf.mxu0
      %v755 = vadd.f32 0.0, %v754
      %756 = vdwg.mxu0
      %757 = vmatpush.xpose.msra.mxu0 0.0
      %758 = vmatpush.xpose.msra.mxu0 0.0
      %759 = vmatpush.xpose.msra.mxu0 0.0
      %760 = vmatpush.xpose.msra.mxu0 0.0
      %761 = vmatpush.xpose.msra.mxu0 0.0
      %762 = vmatpush.xpose.msra.mxu0 0.0
      %763 = vmatpush.xpose.msra.mxu0 0.0
      %764 = vmatpush.xpose.msra.mxu0 0.0
      %765 = vmatpush.xpose.msra.mxu0 0.0
      %766 = vmatpush.xpose.msra.mxu0 0.0
      %767 = vmatpush.xpose.msra.mxu0 0.0
      %768 = vmatpush.xpose.msra.mxu0 0.0
      %769 = vmatpush.xpose.msra.mxu0 0.0
      %770 = vmatpush.xpose.msra.mxu0 0.0
      %771 = vmatpush.xpose.msra.mxu0 0.0
      %772 = vmatpush.xpose.msra.mxu0 %v714
      %773 = vmatmul.f32.gmra.mxu0 %v723
      %v774 = vpop.f32.mrf.mxu0
      %v775 = vadd.f32 %v752, %v774
      %776 = vmatmul.f32.gmra.mxu0 %v726
      %v777 = vpop.f32.mrf.mxu0
      %v778 = vadd.f32 %v755, %v777
      %779 = vdwg.mxu0
      %v780 = vld [vmem:[%s3] sm:$0xff]
      %v781 = vld [vmem:[%s3 + $0x8] sm:$0xff]
      %v782 = vld [vmem:[%s4] sm:$0xff]
      %v783 = vld [vmem:[%s4 + $0x8] sm:$0xff]
      %785 = vset.pattern.permute.xlu0 0
      %786 = vperm.xlu0 %785, %v782
      %v787 = vpop.permute.xlu0 %786
      %790 = vset.pattern.permute.xlu0 0
      %791 = vperm.xlu0 %790, %v783
      %v792 = vpop.permute.xlu0 %791
      %vm794 = vcmask 130048
      %v796 = vsel %vm794, %v780, 0
      %v799 = vsel %vm794, %v781, 0
      %801 = vmatpush.msra.mxu0 0.0
      %802 = vmatpush.msra.mxu0 0.0
      %803 = vmatpush.msra.mxu0 0.0
      %804 = vmatpush.msra.mxu0 0.0
      %805 = vmatpush.msra.mxu0 0.0
      %806 = vmatpush.msra.mxu0 0.0
      %807 = vmatpush.msra.mxu0 0.0
      %808 = vmatpush.msra.mxu0 0.0
      %809 = vmatpush.msra.mxu0 0.0
      %810 = vmatpush.msra.mxu0 0.0
      %811 = vmatpush.msra.mxu0 0.0
      %812 = vmatpush.msra.mxu0 0.0
      %813 = vmatpush.msra.mxu0 0.0
      %814 = vmatpush.msra.mxu0 0.0
      %815 = vmatpush.msra.mxu0 %v778
      %816 = vmatpush.msra.mxu0 %v775
      %817 = vmatmul.f32.gmra.mxu0 %v796
      %v818 = vpop.f32.mrf.mxu0
      %v819 = vadd.f32 %v787, %v818
      %820 = vmatmul.f32.gmra.mxu0 %v799
      %v821 = vpop.f32.mrf.mxu0
      %v822 = vadd.f32 %v792, %v821
      %823 = vdwg.mxu0
      %v824 = vsub.f32 %v775, %v819
      %v825 = vsub.f32 %v778, %v822
      %v826 = vld [vmem:[%s5] sm:$0xff]
      %v827 = vld [vmem:[%s6] sm:$0x1]
      %v829 = vperm.slane %v827, 0
      %vm831 = vcmask 64512
      %v833 = vsel %vm831, %v824, 0
      %v836 = vsel %vm831, %v825, 0
      %838 = vmatpush.msra.mxu0 0.0
      %839 = vmatpush.msra.mxu0 0.0
      %840 = vmatpush.msra.mxu0 0.0
      %841 = vmatpush.msra.mxu0 0.0
      %842 = vmatpush.msra.mxu0 0.0
      %843 = vmatpush.msra.mxu0 0.0
      %844 = vmatpush.msra.mxu0 0.0
      %845 = vmatpush.msra.mxu0 0.0
      %846 = vmatpush.msra.mxu0 0.0
      %847 = vmatpush.msra.mxu0 0.0
      %848 = vmatpush.msra.mxu0 0.0
      %849 = vmatpush.msra.mxu0 0.0
      %850 = vmatpush.msra.mxu0 0.0
      %851 = vmatpush.msra.mxu0 0.0
      %852 = vmatpush.msra.mxu0 0.0
      %853 = vmatpush.msra.mxu0 %v826
      %854 = vmatmul.f32.gmra.mxu0 %v833
      %v855 = vpop.f32.mrf.mxu0
      %v856 = vadd.f32 %v829, %v855
      %857 = vmatmul.f32.gmra.mxu0 %v836
      %v858 = vpop.f32.mrf.mxu0
      %v859 = vadd.f32 %v829, %v858
      %860 = vdwg.mxu0
      %861 = vxpose.xlu0.b32.start [1/16] %v856, 128
      %862 = vxpose.xlu0.b32.cont [2/16] %v859, 128
      %863 = vxpose.xlu0.b32.cont [3/16] 0.0, 128
      %864 = vxpose.xlu0.b32.cont [4/16] 0.0, 128
      %865 = vxpose.xlu0.b32.cont [5/16] 0.0, 128
      %866 = vxpose.xlu0.b32.cont [6/16] 0.0, 128
      %867 = vxpose.xlu0.b32.cont [7/16] 0.0, 128
      %868 = vxpose.xlu0.b32.cont [8/16] 0.0, 128
      %869 = vxpose.xlu0.b32.cont [9/16] 0.0, 128
      %870 = vxpose.xlu0.b32.cont [10/16] 0.0, 128
      %871 = vxpose.xlu0.b32.cont [11/16] 0.0, 128
      %872 = vxpose.xlu0.b32.cont [12/16] 0.0, 128
      %873 = vxpose.xlu0.b32.cont [13/16] 0.0, 128
      %874 = vxpose.xlu0.b32.cont [14/16] 0.0, 128
      %875 = vxpose.xlu0.b32.cont [15/16] 0.0, 128
      %876 = vxpose.xlu0.b32.end [16/16] 0.0, 128
      %v877 = vpop.trf.xlu0
      %v878 = vpop.trf.xlu0
      %v879 = vpop.trf.xlu0
      %v880 = vpop.trf.xlu0
      %v881 = vpop.trf.xlu0
      %v882 = vpop.trf.xlu0
      %v883 = vpop.trf.xlu0
      %v884 = vpop.trf.xlu0
      %v885 = vpop.trf.xlu0
      %v886 = vpop.trf.xlu0
      %v887 = vpop.trf.xlu0
      %v888 = vpop.trf.xlu0
      %v889 = vpop.trf.xlu0
      %v890 = vpop.trf.xlu0
      %v891 = vpop.trf.xlu0
      %v892 = vpop.trf.xlu0
      %v894 = vsel %vm794, %v877, 0
      %896 = vmatpush.msra.mxu0 0.0
      %897 = vmatpush.msra.mxu0 0.0
      %898 = vmatpush.msra.mxu0 0.0
      %899 = vmatpush.msra.mxu0 0.0
      %900 = vmatpush.msra.mxu0 0.0
      %901 = vmatpush.msra.mxu0 0.0
      %902 = vmatpush.msra.mxu0 0.0
      %903 = vmatpush.msra.mxu0 0.0
      %904 = vmatpush.msra.mxu0 0.0
      %905 = vmatpush.msra.mxu0 0.0
      %906 = vmatpush.msra.mxu0 0.0
      %907 = vmatpush.msra.mxu0 0.0
      %908 = vmatpush.msra.mxu0 0.0
      %909 = vmatpush.msra.mxu0 0.0
      %910 = vmatpush.msra.mxu0 %v688
      %911 = vmatpush.msra.mxu0 %v685
      %912 = vmatmul.f32.gmra.mxu0 %v894
      %v913 = vpop.f32.mrf.mxu0
      %v914 = vadd.f32 0.0, %v913
      %915 = vdwg.mxu0
      %916 = vmatpush.msra.mxu0 0.0
      %917 = vmatpush.msra.mxu0 0.0
      %918 = vmatpush.msra.mxu0 0.0
      %919 = vmatpush.msra.mxu0 0.0
      %920 = vmatpush.msra.mxu0 0.0
      %921 = vmatpush.msra.mxu0 0.0
      %922 = vmatpush.msra.mxu0 0.0
      %923 = vmatpush.msra.mxu0 0.0
      %924 = vmatpush.msra.mxu0 0.0
      %925 = vmatpush.msra.mxu0 0.0
      %926 = vmatpush.msra.mxu0 0.0
      %927 = vmatpush.msra.mxu0 0.0
      %928 = vmatpush.msra.mxu0 0.0
      %929 = vmatpush.msra.mxu0 0.0
      %930 = vmatpush.msra.mxu0 %v726
      %931 = vmatpush.msra.mxu0 %v723
      %932 = vmatmul.f32.gmra.mxu0 %v894
      %v933 = vpop.f32.mrf.mxu0
      %v934 = vadd.f32 0.0, %v933
      %935 = vdwg.mxu0
      %936 = vmatpush.xpose.msra.mxu0 0.0
      %937 = vmatpush.xpose.msra.mxu0 0.0
      %938 = vmatpush.xpose.msra.mxu0 0.0
      %939 = vmatpush.xpose.msra.mxu0 0.0
      %940 = vmatpush.xpose.msra.mxu0 0.0
      %941 = vmatpush.xpose.msra.mxu0 0.0
      %942 = vmatpush.xpose.msra.mxu0 0.0
      %943 = vmatpush.xpose.msra.mxu0 0.0
      %944 = vmatpush.xpose.msra.mxu0 0.0
      %945 = vmatpush.xpose.msra.mxu0 0.0
      %946 = vmatpush.xpose.msra.mxu0 0.0
      %947 = vmatpush.xpose.msra.mxu0 0.0
      %948 = vmatpush.xpose.msra.mxu0 0.0
      %949 = vmatpush.xpose.msra.mxu0 0.0
      %950 = vmatpush.xpose.msra.mxu0 0.0
      %951 = vmatpush.xpose.msra.mxu0 %v679
      %952 = vmatmul.f32.gmra.mxu0 %v691
      %v953 = vpop.f32.mrf.mxu0
      %v954 = vadd.f32 0.0, %v953
      %955 = vdwg.mxu0
      %956 = vmatpush.xpose.msra.mxu0 0.0
      %957 = vmatpush.xpose.msra.mxu0 0.0
      %958 = vmatpush.xpose.msra.mxu0 0.0
      %959 = vmatpush.xpose.msra.mxu0 0.0
      %960 = vmatpush.xpose.msra.mxu0 0.0
      %961 = vmatpush.xpose.msra.mxu0 0.0
      %962 = vmatpush.xpose.msra.mxu0 0.0
      %963 = vmatpush.xpose.msra.mxu0 0.0
      %964 = vmatpush.xpose.msra.mxu0 0.0
      %965 = vmatpush.xpose.msra.mxu0 0.0
      %966 = vmatpush.xpose.msra.mxu0 0.0
      %967 = vmatpush.xpose.msra.mxu0 0.0
      %968 = vmatpush.xpose.msra.mxu0 0.0
      %969 = vmatpush.xpose.msra.mxu0 0.0
      %970 = vmatpush.xpose.msra.mxu0 0.0
      %971 = vmatpush.xpose.msra.mxu0 %v717
      %972 = vmatmul.f32.gmra.mxu0 %v729
      %v973 = vpop.f32.mrf.mxu0
      %v974 = vadd.f32 %v954, %v973
      %975 = vdwg.mxu0
      %v976 = vld [vmem:[%s7] sm:$0xff]
      %v977 = vld [vmem:[%s8] sm:$0xff]
      %979 = vset.pattern.permute.xlu0 0
      %980 = vperm.xlu0 %979, %v977
      %v981 = vpop.permute.xlu0 %980
      %v984 = vsel %vm831, %v976, 0
      %986 = vmatpush.msra.mxu0 0.0
      %987 = vmatpush.msra.mxu0 0.0
      %988 = vmatpush.msra.mxu0 0.0
      %989 = vmatpush.msra.mxu0 0.0
      %990 = vmatpush.msra.mxu0 0.0
      %991 = vmatpush.msra.mxu0 0.0
      %992 = vmatpush.msra.mxu0 0.0
      %993 = vmatpush.msra.mxu0 0.0
      %994 = vmatpush.msra.mxu0 0.0
      %995 = vmatpush.msra.mxu0 0.0
      %996 = vmatpush.msra.mxu0 0.0
      %997 = vmatpush.msra.mxu0 0.0
      %998 = vmatpush.msra.mxu0 0.0
      %999 = vmatpush.msra.mxu0 0.0
      %1000 = vmatpush.msra.mxu0 0.0
      %1001 = vmatpush.msra.mxu0 %v974
      %1002 = vmatmul.f32.gmra.mxu0 %v984
      %v1003 = vpop.f32.mrf.mxu0
      %v1004 = vadd.f32 %v981, %v1003
      %1005 = vdwg.mxu0
      %v1006 = vsub.f32 %v974, %v1004
      %v1007 = vld [vmem:[%s9] sm:$0xff]
      %v1008 = vld [vmem:[%s10] sm:$0x1]
      %v1010 = vperm.slane %v1008, 0
      %v1013 = vsel %vm831, %v1006, 0
      %1015 = vmatpush.msra.mxu0 0.0
      %1016 = vmatpush.msra.mxu0 0.0
      %1017 = vmatpush.msra.mxu0 0.0
      %1018 = vmatpush.msra.mxu0 0.0
      %1019 = vmatpush.msra.mxu0 0.0
      %1020 = vmatpush.msra.mxu0 0.0
      %1021 = vmatpush.msra.mxu0 0.0
      %1022 = vmatpush.msra.mxu0 0.0
      %1023 = vmatpush.msra.mxu0 0.0
      %1024 = vmatpush.msra.mxu0 0.0
      %1025 = vmatpush.msra.mxu0 0.0
      %1026 = vmatpush.msra.mxu0 0.0
      %1027 = vmatpush.msra.mxu0 0.0
      %1028 = vmatpush.msra.mxu0 0.0
      %1029 = vmatpush.msra.mxu0 0.0
      %1030 = vmatpush.msra.mxu0 %v1007
      %1031 = vmatmul.f32.gmra.mxu0 %v1013
      %v1032 = vpop.f32.mrf.mxu0
      %v1033 = vadd.f32 %v1010, %v1032
      %1034 = vdwg.mxu0
      %1035 = vxpose.xlu0.b32.start [1/16] %v1033, 128
      %1036 = vxpose.xlu0.b32.cont [2/16] 0.0, 128
      %1037 = vxpose.xlu0.b32.cont [3/16] 0.0, 128
      %1038 = vxpose.xlu0.b32.cont [4/16] 0.0, 128
      %1039 = vxpose.xlu0.b32.cont [5/16] 0.0, 128
      %1040 = vxpose.xlu0.b32.cont [6/16] 0.0, 128
      %1041 = vxpose.xlu0.b32.cont [7/16] 0.0, 128
      %1042 = vxpose.xlu0.b32.cont [8/16] 0.0, 128
      %1043 = vxpose.xlu0.b32.cont [9/16] 0.0, 128
      %1044 = vxpose.xlu0.b32.cont [10/16] 0.0, 128
      %1045 = vxpose.xlu0.b32.cont [11/16] 0.0, 128
      %1046 = vxpose.xlu0.b32.cont [12/16] 0.0, 128
      %1047 = vxpose.xlu0.b32.cont [13/16] 0.0, 128
      %1048 = vxpose.xlu0.b32.cont [14/16] 0.0, 128
      %1049 = vxpose.xlu0.b32.cont [15/16] 0.0, 128
      %1050 = vxpose.xlu0.b32.end [16/16] 0.0, 128
      %v1051 = vpop.trf.xlu0
      %v1052 = vpop.trf.xlu0
      %v1053 = vpop.trf.xlu0
      %v1054 = vpop.trf.xlu0
      %v1055 = vpop.trf.xlu0
      %v1056 = vpop.trf.xlu0
      %v1057 = vpop.trf.xlu0
      %v1058 = vpop.trf.xlu0
      %v1059 = vpop.trf.xlu0
      %v1060 = vpop.trf.xlu0
      %v1061 = vpop.trf.xlu0
      %v1062 = vpop.trf.xlu0
      %v1063 = vpop.trf.xlu0
      %v1064 = vpop.trf.xlu0
      %v1065 = vpop.trf.xlu0
      %v1066 = vpop.trf.xlu0
      %v1068 = vsel %vm831, %v1051, 0
      %1070 = vmatpush.msra.mxu0 0.0
      %1071 = vmatpush.msra.mxu0 0.0
      %1072 = vmatpush.msra.mxu0 0.0
      %1073 = vmatpush.msra.mxu0 0.0
      %1074 = vmatpush.msra.mxu0 0.0
      %1075 = vmatpush.msra.mxu0 0.0
      %1076 = vmatpush.msra.mxu0 0.0
      %1077 = vmatpush.msra.mxu0 0.0
      %1078 = vmatpush.msra.mxu0 0.0
      %1079 = vmatpush.msra.mxu0 0.0
      %1080 = vmatpush.msra.mxu0 0.0
      %1081 = vmatpush.msra.mxu0 0.0
      %1082 = vmatpush.msra.mxu0 0.0
      %1083 = vmatpush.msra.mxu0 0.0
      %1084 = vmatpush.msra.mxu0 0.0
      %1085 = vmatpush.msra.mxu0 %v691
      %1086 = vmatmul.f32.gmra.mxu0 %v1068
      %v1087 = vpop.f32.mrf.mxu0
      %v1088 = vadd.f32 0.0, %v1087
      %1089 = vdwg.mxu0
      %1090 = vmatpush.msra.mxu0 0.0
      %1091 = vmatpush.msra.mxu0 0.0
      %1092 = vmatpush.msra.mxu0 0.0
      %1093 = vmatpush.msra.mxu0 0.0
      %1094 = vmatpush.msra.mxu0 0.0
      %1095 = vmatpush.msra.mxu0 0.0
      %1096 = vmatpush.msra.mxu0 0.0
      %1097 = vmatpush.msra.mxu0 0.0
      %1098 = vmatpush.msra.mxu0 0.0
      %1099 = vmatpush.msra.mxu0 0.0
      %1100 = vmatpush.msra.mxu0 0.0
      %1101 = vmatpush.msra.mxu0 0.0
      %1102 = vmatpush.msra.mxu0 0.0
      %1103 = vmatpush.msra.mxu0 0.0
      %1104 = vmatpush.msra.mxu0 0.0
      %1105 = vmatpush.msra.mxu0 %v729
      %1106 = vmatmul.f32.gmra.mxu0 %v1068
      %v1107 = vpop.f32.mrf.mxu0
      %v1108 = vadd.f32 0.0, %v1107
      %1109 = vdwg.mxu0
      %1110 = vmatpush.xpose.msra.mxu0 0.0
      %1111 = vmatpush.xpose.msra.mxu0 0.0
      %1112 = vmatpush.xpose.msra.mxu0 0.0
      %1113 = vmatpush.xpose.msra.mxu0 0.0
      %1114 = vmatpush.xpose.msra.mxu0 0.0
      %1115 = vmatpush.xpose.msra.mxu0 0.0
      %1116 = vmatpush.xpose.msra.mxu0 0.0
      %1117 = vmatpush.xpose.msra.mxu0 0.0
      %1118 = vmatpush.xpose.msra.mxu0 0.0
      %1119 = vmatpush.xpose.msra.mxu0 0.0
      %1120 = vmatpush.xpose.msra.mxu0 0.0
      %1121 = vmatpush.xpose.msra.mxu0 0.0
      %1122 = vmatpush.xpose.msra.mxu0 0.0
      %1123 = vmatpush.xpose.msra.mxu0 0.0
      %1124 = vmatpush.xpose.msra.mxu0 0.0
      %1125 = vmatpush.xpose.msra.mxu0 %v682
      %1126 = vmatmul.f32.gmra.mxu0 %v694
      %v1127 = vpop.f32.mrf.mxu0
      %v1128 = vadd.f32 0.0, %v1127
      %1129 = vdwg.mxu0
      %1130 = vmatpush.xpose.msra.mxu0 0.0
      %1131 = vmatpush.xpose.msra.mxu0 0.0
      %1132 = vmatpush.xpose.msra.mxu0 0.0
      %1133 = vmatpush.xpose.msra.mxu0 0.0
      %1134 = vmatpush.xpose.msra.mxu0 0.0
      %1135 = vmatpush.xpose.msra.mxu0 0.0
      %1136 = vmatpush.xpose.msra.mxu0 0.0
      %1137 = vmatpush.xpose.msra.mxu0 0.0
      %1138 = vmatpush.xpose.msra.mxu0 0.0
      %1139 = vmatpush.xpose.msra.mxu0 0.0
      %1140 = vmatpush.xpose.msra.mxu0 0.0
      %1141 = vmatpush.xpose.msra.mxu0 0.0
      %1142 = vmatpush.xpose.msra.mxu0 0.0
      %1143 = vmatpush.xpose.msra.mxu0 0.0
      %1144 = vmatpush.xpose.msra.mxu0 0.0
      %1145 = vmatpush.xpose.msra.mxu0 %v720
      %1146 = vmatmul.f32.gmra.mxu0 %v732
      %v1147 = vpop.f32.mrf.mxu0
      %v1148 = vadd.f32 %v1128, %v1147
      %1149 = vdwg.mxu0
      %v1150 = vld [vmem:[%s11] sm:$0xf]
      %v1151 = vld [vmem:[%s12] sm:$0xf]
      %1153 = vset.pattern.permute.xlu0 0
      %1154 = vperm.xlu0 %1153, %v1151
      %v1155 = vpop.permute.xlu0 %1154
      %v1158 = vsel %vm631, %v1150, 0
      %v1161 = vsel %vm653, %v1148, 0
      %1163 = vmatpush.msra.mxu0 0.0
      %1164 = vmatpush.msra.mxu0 0.0
      %1165 = vmatpush.msra.mxu0 0.0
      %1166 = vmatpush.msra.mxu0 0.0
      %1167 = vmatpush.msra.mxu0 0.0
      %1168 = vmatpush.msra.mxu0 0.0
      %1169 = vmatpush.msra.mxu0 0.0
      %1170 = vmatpush.msra.mxu0 0.0
      %1171 = vmatpush.msra.mxu0 0.0
      %1172 = vmatpush.msra.mxu0 0.0
      %1173 = vmatpush.msra.mxu0 0.0
      %1174 = vmatpush.msra.mxu0 0.0
      %1175 = vmatpush.msra.mxu0 0.0
      %1176 = vmatpush.msra.mxu0 0.0
      %1177 = vmatpush.msra.mxu0 0.0
      %1178 = vmatpush.msra.mxu0 %v1161
      %1179 = vmatmul.f32.gmra.mxu0 %v1158
      %v1180 = vpop.f32.mrf.mxu0
      %v1181 = vadd.f32 %v1155, %v1180
      %1182 = vdwg.mxu0
      %v1183 = vsub.f32 %v1148, %v1181
      %v1184 = vld [vmem:[%s13] sm:$0xff]
      %v1185 = vld [vmem:[%s14] sm:$0x1]
      %v1187 = vperm.slane %v1185, 0
      %v1190 = vsel %vm831, %v1183, 0
      %1192 = vmatpush.msra.mxu0 0.0
      %1193 = vmatpush.msra.mxu0 0.0
      %1194 = vmatpush.msra.mxu0 0.0
      %1195 = vmatpush.msra.mxu0 0.0
      %1196 = vmatpush.msra.mxu0 0.0
      %1197 = vmatpush.msra.mxu0 0.0
      %1198 = vmatpush.msra.mxu0 0.0
      %1199 = vmatpush.msra.mxu0 0.0
      %1200 = vmatpush.msra.mxu0 0.0
      %1201 = vmatpush.msra.mxu0 0.0
      %1202 = vmatpush.msra.mxu0 0.0
      %1203 = vmatpush.msra.mxu0 0.0
      %1204 = vmatpush.msra.mxu0 0.0
      %1205 = vmatpush.msra.mxu0 0.0
      %1206 = vmatpush.msra.mxu0 0.0
      %1207 = vmatpush.msra.mxu0 %v1184
      %1208 = vmatmul.f32.gmra.mxu0 %v1190
      %v1209 = vpop.f32.mrf.mxu0
      %v1210 = vadd.f32 %v1187, %v1209
      %1211 = vdwg.mxu0
      %1212 = vxpose.xlu0.b32.start [1/16] %v1210, 128
      %1213 = vxpose.xlu0.b32.cont [2/16] 0.0, 128
      %1214 = vxpose.xlu0.b32.cont [3/16] 0.0, 128
      %1215 = vxpose.xlu0.b32.cont [4/16] 0.0, 128
      %1216 = vxpose.xlu0.b32.cont [5/16] 0.0, 128
      %1217 = vxpose.xlu0.b32.cont [6/16] 0.0, 128
      %1218 = vxpose.xlu0.b32.cont [7/16] 0.0, 128
      %1219 = vxpose.xlu0.b32.cont [8/16] 0.0, 128
      %1220 = vxpose.xlu0.b32.cont [9/16] 0.0, 128
      %1221 = vxpose.xlu0.b32.cont [10/16] 0.0, 128
      %1222 = vxpose.xlu0.b32.cont [11/16] 0.0, 128
      %1223 = vxpose.xlu0.b32.cont [12/16] 0.0, 128
      %1224 = vxpose.xlu0.b32.cont [13/16] 0.0, 128
      %1225 = vxpose.xlu0.b32.cont [14/16] 0.0, 128
      %1226 = vxpose.xlu0.b32.cont [15/16] 0.0, 128
      %1227 = vxpose.xlu0.b32.end [16/16] 0.0, 128
      %v1228 = vpop.trf.xlu0
      %v1229 = vpop.trf.xlu0
      %v1230 = vpop.trf.xlu0
      %v1231 = vpop.trf.xlu0
      %v1232 = vpop.trf.xlu0
      %v1233 = vpop.trf.xlu0
      %v1234 = vpop.trf.xlu0
      %v1235 = vpop.trf.xlu0
      %v1236 = vpop.trf.xlu0
      %v1237 = vpop.trf.xlu0
      %v1238 = vpop.trf.xlu0
      %v1239 = vpop.trf.xlu0
      %v1240 = vpop.trf.xlu0
      %v1241 = vpop.trf.xlu0
      %v1242 = vpop.trf.xlu0
      %v1243 = vpop.trf.xlu0
      %v1245 = vsel %vm631, %v1228, 0
      %v1248 = vsel %vm653, %v694, 0
      %v1251 = vsel %vm653, %v732, 0
      %1253 = vmatpush.msra.mxu0 0.0
      %1254 = vmatpush.msra.mxu0 0.0
      %1255 = vmatpush.msra.mxu0 0.0
      %1256 = vmatpush.msra.mxu0 0.0
      %1257 = vmatpush.msra.mxu0 0.0
      %1258 = vmatpush.msra.mxu0 0.0
      %1259 = vmatpush.msra.mxu0 0.0
      %1260 = vmatpush.msra.mxu0 0.0
      %1261 = vmatpush.msra.mxu0 0.0
      %1262 = vmatpush.msra.mxu0 0.0
      %1263 = vmatpush.msra.mxu0 0.0
      %1264 = vmatpush.msra.mxu0 0.0
      %1265 = vmatpush.msra.mxu0 0.0
      %1266 = vmatpush.msra.mxu0 0.0
      %1267 = vmatpush.msra.mxu0 0.0
      %1268 = vmatpush.msra.mxu0 %v1248
      %1269 = vmatmul.f32.gmra.mxu0 %v1245
      %v1270 = vpop.f32.mrf.mxu0
      %v1271 = vadd.f32 0.0, %v1270
      %1272 = vdwg.mxu0
      %1273 = vmatpush.msra.mxu0 0.0
      %1274 = vmatpush.msra.mxu0 0.0
      %1275 = vmatpush.msra.mxu0 0.0
      %1276 = vmatpush.msra.mxu0 0.0
      %1277 = vmatpush.msra.mxu0 0.0
      %1278 = vmatpush.msra.mxu0 0.0
      %1279 = vmatpush.msra.mxu0 0.0
      %1280 = vmatpush.msra.mxu0 0.0
      %1281 = vmatpush.msra.mxu0 0.0
      %1282 = vmatpush.msra.mxu0 0.0
      %1283 = vmatpush.msra.mxu0 0.0
      %1284 = vmatpush.msra.mxu0 0.0
      %1285 = vmatpush.msra.mxu0 0.0
      %1286 = vmatpush.msra.mxu0 0.0
      %1287 = vmatpush.msra.mxu0 0.0
      %1288 = vmatpush.msra.mxu0 %v1251
      %1289 = vmatmul.f32.gmra.mxu0 %v1245
      %v1290 = vpop.f32.mrf.mxu0
      %v1291 = vadd.f32 0.0, %v1290
      %1292 = vdwg.mxu0
      %v1293 = vld [vmem:[%s16] sm:$0xf]
      %vm1294 = vcmask 195584
      %v1296 = vsel %vm1294, %v1293, 0
      %1298 = vmatpush.msra.mxu0 0.0
      %1299 = vmatpush.msra.mxu0 0.0
      %1300 = vmatpush.msra.mxu0 0.0
      %1301 = vmatpush.msra.mxu0 0.0
      %1302 = vmatpush.msra.mxu0 0.0
      %1303 = vmatpush.msra.mxu0 0.0
      %1304 = vmatpush.msra.mxu0 0.0
      %1305 = vmatpush.msra.mxu0 0.0
      %1306 = vmatpush.msra.mxu0 0.0
      %1307 = vmatpush.msra.mxu0 0.0
      %1308 = vmatpush.msra.mxu0 0.0
      %1309 = vmatpush.msra.mxu0 0.0
      %1310 = vmatpush.msra.mxu0 0.0
      %1311 = vmatpush.msra.mxu0 %v1271
      %1312 = vmatpush.msra.mxu0 %v1088
      %1313 = vmatpush.msra.mxu0 %v914
      %1314 = vmatmul.f32.gmra.mxu0 %v1296
      %v1315 = vpop.f32.mrf.mxu0
      %v1316 = vadd.f32 0.0, %v1315
      %1317 = vdwg.mxu0
      %1318 = vmatpush.msra.mxu0 0.0
      %1319 = vmatpush.msra.mxu0 0.0
      %1320 = vmatpush.msra.mxu0 0.0
      %1321 = vmatpush.msra.mxu0 0.0
      %1322 = vmatpush.msra.mxu0 0.0
      %1323 = vmatpush.msra.mxu0 0.0
      %1324 = vmatpush.msra.mxu0 0.0
      %1325 = vmatpush.msra.mxu0 0.0
      %1326 = vmatpush.msra.mxu0 0.0
      %1327 = vmatpush.msra.mxu0 0.0
      %1328 = vmatpush.msra.mxu0 0.0
      %1329 = vmatpush.msra.mxu0 0.0
      %1330 = vmatpush.msra.mxu0 0.0
      %1331 = vmatpush.msra.mxu0 %v1291
      %1332 = vmatpush.msra.mxu0 %v1108
      %1333 = vmatpush.msra.mxu0 %v934
      %1334 = vmatmul.f32.gmra.mxu0 %v1296
      %v1335 = vpop.f32.mrf.mxu0
      %v1336 = vadd.f32 0.0, %v1335
      %1337 = vdwg.mxu0
      %1338 = vst [vmem:[#allocation1] ss:$2 sm:$0xff] %v576
      %v1339 = vld.sshfl [vmem:[#allocation1] sm:$0xff pattern:$0x75316420]
      %v1340 = vld.sshfl [vmem:[#allocation1 + $0x8] sm:$0xff pattern:$0x75316420]
      %v1342 = vsel %vm631, %v577, 0
      %v1344 = vsel %vm653, %v1339, 0
      %v1346 = vsel %vm653, %v1340, 0
      %1348 = vmatpush.msra.mxu0 0.0
      %1349 = vmatpush.msra.mxu0 0.0
      %1350 = vmatpush.msra.mxu0 0.0
      %1351 = vmatpush.msra.mxu0 0.0
      %1352 = vmatpush.msra.mxu0 0.0
      %1353 = vmatpush.msra.mxu0 0.0
      %1354 = vmatpush.msra.mxu0 0.0
      %1355 = vmatpush.msra.mxu0 0.0
      %1356 = vmatpush.msra.mxu0 0.0
      %1357 = vmatpush.msra.mxu0 0.0
      %1358 = vmatpush.msra.mxu0 0.0
      %1359 = vmatpush.msra.mxu0 0.0
      %1360 = vmatpush.msra.mxu0 0.0
      %1361 = vmatpush.msra.mxu0 0.0
      %1362 = vmatpush.msra.mxu0 0.0
      %1363 = vmatpush.msra.mxu0 %v1344
      %1364 = vmatmul.f32.gmra.mxu0 %v1342
      %v1365 = vpop.f32.mrf.mxu0
      %v1366 = vadd.f32 %v1316, %v1365
      %1367 = vdwg.mxu0
      %1368 = vmatpush.msra.mxu0 0.0
      %1369 = vmatpush.msra.mxu0 0.0
      %1370 = vmatpush.msra.mxu0 0.0
      %1371 = vmatpush.msra.mxu0 0.0
      %1372 = vmatpush.msra.mxu0 0.0
      %1373 = vmatpush.msra.mxu0 0.0
      %1374 = vmatpush.msra.mxu0 0.0
      %1375 = vmatpush.msra.mxu0 0.0
      %1376 = vmatpush.msra.mxu0 0.0
      %1377 = vmatpush.msra.mxu0 0.0
      %1378 = vmatpush.msra.mxu0 0.0
      %1379 = vmatpush.msra.mxu0 0.0
      %1380 = vmatpush.msra.mxu0 0.0
      %1381 = vmatpush.msra.mxu0 0.0
      %1382 = vmatpush.msra.mxu0 0.0
      %1383 = vmatpush.msra.mxu0 %v1346
      %1384 = vmatmul.f32.gmra.mxu0 %v1342
      %v1385 = vpop.f32.mrf.mxu0
      %v1386 = vadd.f32 %v1336, %v1385
      %1387 = vdwg.mxu0
      %v1388 = vld [vmem:[%s17] sm:$0xf]
      %1390 = vset.pattern.permute.xlu0 0
      %1391 = vperm.xlu0 %1390, %v1388
      %v1392 = vpop.permute.xlu0 %1391
      %v1394 = vadd.f32 %v1366, %v1392
      %v1395 = vadd.f32 %v1386, %v1392
      %v1398 = vrot.slane %v1395, 4
      %v1399 = vsel %vm653, %v1394, %v1398
      %1401 = vst [vmem:[%s575] sm:$0xff] %v1399
      %p1402 = scmp.lt.s32.totalorder %s29, 1
      %s1403 = scalar_select %p1402, %s29, 1
      %s1404 = smul.addr %s1403, 2
      %s1405 = smul.addr %s1404, 4
      %s1406 = scalar_lea.vmem %s18, %s1405
      // Predicated region
      $region93: #{mgcn_rgb_forward.1} parent=91 // pred_check
        %p1407 = pneg %p430
      $region94: #{mgcn_rgb_forward.1} parent=91 // pred_check_branch
        %1409 = sbr.rel (%p1407) target = $region96
      $region95: #{mgcn_rgb_forward.1} parent=91 // pred_region
        _
      $region96: #{mgcn_rgb_forward.1} parent=91 // pred_fallthru
        _
    $region92: #{mgcn_rgb_forward.1} parent=5 // pred_fallthru
      _
    %p1410 = scmp.le.s32.totalorder 2, %s24
    // Predicated region
    $region97: #{mgcn_rgb_forward.1} parent=5 // pred_check
      %p1411 = pneg %p1410
    $region98: #{mgcn_rgb_forward.1} parent=5 // pred_check_branch
      %1413 = sbr.rel (%p1411) target = $region100
    $region99: #{mgcn_rgb_forward.1} parent=5 // pred_region
      %s1414 = ssub.s32 %s24, 2
      // Predicated region
      $region101: #{mgcn_rgb_forward.1} parent=99 // pred_check
        %p1415 = pneg %p436
      $region102: #{mgcn_rgb_forward.1} parent=99 // pred_check_branch
        %1417 = sbr.rel (%p1415) target = $region104
      $region103: #{mgcn_rgb_forward.1} parent=99 // pred_region
        %p1418 = scmp.lt.s32.totalorder %s30, 1
        %s1419 = scalar_select %p1418, %s30, 1
        %s1420 = smul.addr %s1419, 2
        %s1421 = smul.addr %s1420, 4
        %s1422 = scalar_lea.vmem %s18, %s1421
      $region104: #{mgcn_rgb_forward.1} parent=99 // pred_fallthru
        _
    $region100: #{mgcn_rgb_forward.1} parent=5 // pred_fallthru
      _
  $region6: #{mgcn_rgb_forward.1} parent=0 // loop_footer
    %s28 = sadd.s32 1, %s24
  $region7: #{mgcn_rgb_forward.1} parent=0 // loop_footer_branch
    %23 = sbr.rel target = $region3
  $region8: #{mgcn_rgb_forward.1} parent=0 // loop_exit
    _

</llo_original>
